<compile_context>
chip_gen: v6e
topology: v6e:2x2x1
jax: 0.10.0
libtpu: 0.0.40
codegen_flags: <defaults>
</compile_context>

<pallas_src>
import functools

import jax
import jax.numpy as jnp
from jax import lax
from jax.experimental import pallas as pl
from jax.experimental.pallas import tpu as pltpu


# ----------------------------------------------------------------------------
# Pallas kernel: full bottleneck for one batch tile of rows = imgs*H*W pixels.
# ----------------------------------------------------------------------------
def bottleneck_kernel(mask_ref, x_ref,
                      w1_ref, s1_ref, b1_ref,
                      w2_ref, s2_ref, b2_ref,
                      w3_ref, s3_ref, b3_ref,
                      o_ref,
                      h1_buf, *maybe_col,
                      rows, pad, W, width, use_im2col):
    cdt = w1_ref.dtype                      # compute dtype (bf16 by default)

    # Halo rows only keep the static tap windows in bounds; their contents are
    # always masked out below.  Zero them once anyway so stale NaN/Inf from a
    # previous kernel's VMEM can never leak (scratch persists across steps).
    @pl.when(pl.program_id(0) == 0)
    def _():
        h1_buf[0:pad, :] = jnp.zeros((pad, width), cdt)
        h1_buf[pad + rows:pad + rows + pad, :] = jnp.zeros((pad, width), cdt)

    # --- conv1x1 + bn1 + relu : (rows, Cin) x (Cin, width) -------------------
    h1 = jnp.dot(x_ref[...].astype(cdt), w1_ref[...],
                 preferred_element_type=jnp.float32)
    h1 = jnp.maximum(h1 * s1_ref[...] + b1_ref[...], 0.0)
    # Stage once, in the compute dtype (halves the bytes re-read by 9 taps).
    h1_buf[pl.ds(pad, rows), :] = h1.astype(cdt)

    # Precomputed, grid-invariant border masks (one lane per tap).
    mask = mask_ref[...]                    # (rows, 16) f32, values {0,1}

    def tap(t):
        dy, dx = t // 3, t % 3
        start = pad + (dy - 1) * W + (dx - 1)        # static sublane offset
        win = h1_buf[pl.ds(start, rows), :]          # (rows, width) cdt
        valid = mask[:, t:t + 1] > 0.0               # (rows, 1) bool
        return jnp.where(valid, win, jnp.zeros((), cdt))

    # --- 3x3 conv (stride 1, pad 1) ------------------------------------------
    if use_im2col:
        # width % 128 == 0: lane-aligned col_buf stores, one fused K=9*width
        # contraction.  w2_ref is (9*width, width), tap-major rows.
        col_buf, = maybe_col
        for t in range(9):
            col_buf[:, t * width:(t + 1) * width] = tap(t)
        h2 = jnp.dot(col_buf[...], w2_ref[...],
                     preferred_element_type=jnp.float32)
    else:
        # Narrow stages: accumulate nine K=width matmuls directly; avoids the
        # lane-misaligned col_buf stores and the extra VMEM slab.
        # w2_ref is (9, width, width).
        h2 = jnp.dot(tap(0), w2_ref[0], preferred_element_type=jnp.float32)
        for t in range(1, 9):
            h2 = h2 + jnp.dot(tap(t), w2_ref[t],
                              preferred_element_type=jnp.float32)
    h2 = jnp.maximum(h2 * s2_ref[...] + b2_ref[...], 0.0)

    # --- conv1x1 + bn3 --------------------------------------------------------
    h3 = jnp.dot(h2.astype(cdt), w3_ref[...],
                 preferred_element_type=jnp.float32)
    h3 = h3 * s3_ref[...] + b3_ref[...]

    # --- residual add (f32) + relu -------------------------------------------
    o_ref[...] = jnp.maximum(h3 + x_ref[...].astype(jnp.float32),
                             0.0).astype(o_ref.dtype)


# ----------------------------------------------------------------------------
# VMEM budgeting and tile selection
# ----------------------------------------------------------------------------
def _default_vmem_budget_bytes():
    """Per-TensorCore VMEM budget, generation aware (v7x has 64 MiB/TC)."""
    try:
        cap = pltpu.get_tpu_info().vmem_capacity_bytes
    except Exception:
        cap = 64 << 20                       # conservative, v7x-sized fallback
    return min(int(cap * 3 // 4), 96 << 20)  # 48 MiB on v7x, 96 MiB on v5e/v6e


def _vmem_step_bytes(rows, pad, Cin, Cout, width, x_bytes, out_bytes, c_bytes,
                     use_im2col):
    b = 2 * rows * Cin * x_bytes              # x, double-buffered
    b += 2 * rows * Cout * out_bytes          # out, double-buffered
    b += (rows + 2 * pad) * width * c_bytes   # h1 halo slab
    if use_im2col:
        b += rows * 9 * width * c_bytes       # im2col slab
    b += 2 * rows * 16 * 4                    # tap masks
    b += 2 * (Cin * width + 9 * width * width + width * Cout) * c_bytes  # W
    b += 2 * 2 * (2 * width + Cout) * 4       # bn scale/bias
    return b


def _pick_images_per_step(N, H, W, Cin, Cout, width, x_bytes, out_bytes,
                          c_bytes, use_im2col, budget_bytes):
    """Largest images-per-step whose working set fits the VMEM budget.

    Prefers configurations whose grid length is even (so the "parallel" batch
    axis splits evenly across v7x's two TensorCores), then >= 2, then any.
    """
    M = H * W
    pad = -(-(W + 1) // 16) * 16              # halo rows, 16-aligned (bf16)
    fits = []
    for d in range(1, N + 1):
        if N % d:
            continue
        rows = d * M
        if rows % 8 != 0 and d != N:
            continue                          # would violate (8,128) blocking
        if _vmem_step_bytes(rows, pad, Cin, Cout, width, x_bytes, out_bytes,
                            c_bytes, use_im2col) <= budget_bytes:
            fits.append(d)
    if not fits:
        fits = [1]                            # smallest tile; let compiler try
    even = [d for d in fits if (N // d) % 2 == 0]
    multi = [d for d in fits if (N // d) >= 2]
    if even:
        return max(even), pad
    if multi:
        return max(multi), pad
    return max(fits), pad


def _make_tap_masks(images_per_step, H, W):
    """(rows, 16) f32 slab; lane t holds the border-validity mask of tap t."""
    yy = jnp.repeat(jnp.arange(H), W)
    xx = jnp.tile(jnp.arange(W), H)
    cols = []
    for dy in (-1, 0, 1):
        for dx in (-1, 0, 1):
            cols.append((yy + dy >= 0) & (yy + dy < H) &
                        (xx + dx >= 0) & (xx + dx < W))
    m = jnp.stack(cols, axis=1).astype(jnp.float32)      # (H*W, 9)
    m = jnp.pad(m, ((0, 0), (0, 7)))                     # (H*W, 16)
    return jnp.tile(m, (images_per_step, 1))             # (rows, 16)


# ----------------------------------------------------------------------------
# Wrapper: NCHW <-> flat channels-last plumbing + pallas_call
# ----------------------------------------------------------------------------
def bottleneck_pallas(x_nchw, kparams, compute_dtype=jnp.bfloat16,
                      images_per_step=None, use_im2col=None,
                      out_dtype=jnp.float32, vmem_budget_bytes=None):
    (w1, s1, b1, w2, s2, b2, w3, s3, b3) = kparams
    N, Cin, H, W = x_nchw.shape
    M = H * W
    width = w1.shape[1]
    Cout = w3.shape[1]
    assert Cout == Cin, "identity add requires Cout == Cin (no downsample)"
    # TODO(synk): stride>1, the downsample branch, groups>1 and training-mode
    #             BatchNorm are not modeled (identity path, eval-mode BN only).

    if use_im2col is None:
        use_im2col = (width % 128 == 0)       # fused K only when lane-aligned
    if vmem_budget_bytes is None:
        vmem_budget_bytes = _default_vmem_budget_bytes()

    x_bytes = jnp.dtype(compute_dtype).itemsize
    out_bytes = jnp.dtype(out_dtype).itemsize
    c_bytes = jnp.dtype(compute_dtype).itemsize

    if images_per_step is None:
        images_per_step, pad = _pick_images_per_step(
            N, H, W, Cin, Cout, width, x_bytes, out_bytes, c_bytes,
            use_im2col, vmem_budget_bytes)
    else:
        pad = -(-(W + 1) // 16) * 16
    assert N % images_per_step == 0
    rows = images_per_step * M
    grid_len = N // images_per_step
    assert rows % 8 == 0 or grid_len == 1, (
        "row tile must be sublane-aligned when the grid has >1 step")

    # NCHW -> flat channels-last [N*H*W, C], streamed in the compute dtype to
    # cut HBM bytes (the kernel is HBM-bound for most ResNet stages); the
    # residual add upcasts to f32 in-kernel.
    # TODO(synk): in a full network, keep activations flat/channels-last
    # between blocks instead of transposing around every call.
    x_flat = jnp.transpose(x_nchw, (0, 2, 3, 1)).reshape(N * M, Cin)
    x_flat = x_flat.astype(compute_dtype)

    w1c = w1.astype(compute_dtype)                        # (Cin, width)
    w3c = w3.astype(compute_dtype)                        # (width, Cout)
    if use_im2col:
        w2c = w2.astype(compute_dtype)                    # (9*width, width)
    else:
        w2c = w2.astype(compute_dtype).reshape(9, width, width)

    masks = _make_tap_masks(images_per_step, H, W)        # (rows, 16) f32

    kernel = functools.partial(bottleneck_kernel, rows=rows, pad=pad, W=W,
                               width=width, use_im2col=use_im2col)

    def const_spec(shape):
        nd = len(shape)
        return pl.BlockSpec(shape, lambda i, _nd=nd: (0,) * _nd)

    scratch = [pltpu.VMEM((rows + 2 * pad, width), compute_dtype)]   # halo slab
    if use_im2col:
        scratch.append(pltpu.VMEM((rows, 9 * width), compute_dtype))  # im2col

    # NOTE: if profiling shows exposed DMA at step boundaries and VMEM headroom
    # remains, pipeline_mode=pl.Buffered(3) on the x/out specs is the next lever.
    out_flat = pl.pallas_call(
        kernel,
        out_shape=jax.ShapeDtypeStruct((N * M, Cout), out_dtype),
        grid=(grid_len,),
        in_specs=[
            const_spec(masks.shape),                        # tap masks (resident)
            pl.BlockSpec((rows, Cin), lambda i: (i, 0)),    # x (streamed)
            const_spec(w1c.shape), const_spec(s1.shape), const_spec(b1.shape),
            const_spec(w2c.shape), const_spec(s2.shape), const_spec(b2.shape),
            const_spec(w3c.shape), const_spec(s3.shape), const_spec(b3.shape),
        ],
        out_specs=pl.BlockSpec((rows, Cout), lambda i: (i, 0)),
        scratch_shapes=scratch,
        compiler_params=pltpu.CompilerParams(
            dimension_semantics=("parallel",),              # batch tiles indep.
            vmem_limit_bytes=int(vmem_budget_bytes)),
    )(masks, x_flat, w1c, s1, b1, w2c, s2, b2, w3c, s3, b3)

    return jnp.transpose(out_flat.reshape(N, H, W, Cout), (0, 3, 1, 2))


# ----------------------------------------------------------------------------
# Deterministic parameter construction (PyTorch layouts), BN folding, reference
# ----------------------------------------------------------------------------
def make_bn(key, c):
    k1, k2, k3, k4 = jax.random.split(key, 4)
    gamma = 1.0 + 0.1 * jax.random.normal(k1, (c,), jnp.float32)
    beta = 0.1 * jax.random.normal(k2, (c,), jnp.float32)
    mean = 0.1 * jax.random.normal(k3, (c,), jnp.float32)
    var = 0.5 + 0.5 * jnp.abs(jax.random.normal(k4, (c,), jnp.float32))
    return gamma, beta, mean, var


def fold_bn(bn, eps=1e-5):
    gamma, beta, mean, var = bn
    scale = gamma / jnp.sqrt(var + eps)
    bias = beta - mean * scale
    return scale.reshape(1, -1), bias.reshape(1, -1)


def make_params(key, inplanes, planes, base_width=64, groups=1):
    expansion = 4
    width = int(planes * (base_width / 64.0)) * groups
    ks = jax.random.split(key, 6)
    # PyTorch conv weights: (out, in, kh, kw)
    w1_t = 0.2 * jax.random.normal(ks[0], (width, inplanes, 1, 1), jnp.float32)
    w2_t = 0.2 * jax.random.normal(ks[1], (width, width, 3, 3), jnp.float32)
    w3_t = 0.2 * jax.random.normal(ks[2], (planes * expansion, width, 1, 1),
                                   jnp.float32)
    bn1 = make_bn(ks[3], width)
    bn2 = make_bn(ks[4], width)
    bn3 = make_bn(ks[5], planes * expansion)
    torch_params = (w1_t, bn1, w2_t, bn2, w3_t, bn3)

    # Kernel-layout weights: (Cin, Cout) matmul weights; 3x3 taps stacked
    # dy-major along the contraction axis.
    w1 = jnp.transpose(w1_t[:, :, 0, 0])                          # (Cin, width)
    w2 = jnp.concatenate(
        [jnp.transpose(w2_t[:, :, dy, dx]) for dy in range(3) for dx in range(3)],
        axis=0)                                                   # (9*width, width)
    w3 = jnp.transpose(w3_t[:, :, 0, 0])                          # (width, Cout)
    s1, b1 = fold_bn(bn1)
    s2, b2 = fold_bn(bn2)
    s3, b3 = fold_bn(bn3)
    kparams = (w1, s1, b1, w2, s2, b2, w3, s3, b3)
    return torch_params, kparams


def ref_forward(x, torch_params, eps=1e-5):
    """Pure-JAX NCHW reference of Bottleneck.forward (eval-mode BN)."""
    w1_t, bn1, w2_t, bn2, w3_t, bn3 = torch_params

    def conv(x, w, pad):
        return lax.conv_general_dilated(
            x, w, window_strides=(1, 1), padding=pad,
            dimension_numbers=('NCHW', 'OIHW', 'NCHW'))

    def bn(x, p):
        g, b, m, v = p
        g, b, m, v = (t[None, :, None, None] for t in (g, b, m, v))
        return (x - m) / jnp.sqrt(v + eps) * g + b

    out = jax.nn.relu(bn(conv(x, w1_t, [(0, 0), (0, 0)]), bn1))
    out = jax.nn.relu(bn(conv(out, w2_t, [(1, 1), (1, 1)]), bn2))
    out = bn(conv(out, w3_t, [(0, 0), (0, 0)]), bn3)
    return jax.nn.relu(out + x)


if __name__ == "__main__":
    key = jax.random.PRNGKey(0)
    k_x, k_p = jax.random.split(key)

    # Small structural-correctness shape only (NOT a perf shape: Cout=16 < 128
    # lanes under-fills the MXU; real stages have width>=64, Cout>=256).
    N, inplanes, planes, H, W = 2, 16, 4, 8, 8
    x = jax.random.normal(k_x, (N, inplanes, H, W), jnp.float32)

    torch_params, kparams = make_params(k_p, inplanes, planes)
    ref = jax.block_until_ready(ref_forward(x, torch_params))

    # f32 compute, per-tap accumulate path (auto-selected: width % 128 != 0).
    out_tap = jax.block_until_ready(
        bottleneck_pallas(x, kparams, compute_dtype=jnp.float32))
    assert out_tap.shape == ref.shape == (N, planes * 4, H, W)
    assert jnp.allclose(out_tap, ref, rtol=1e-4, atol=1e-4), (
        "f32 per-tap max err:", float(jnp.max(jnp.abs(out_tap - ref))))

    # f32 compute, fused im2col path (forced; used for width % 128 == 0 stages).
    out_col = jax.block_until_ready(
        bottleneck_pallas(x, kparams, compute_dtype=jnp.float32,
                          use_im2col=True))
    assert jnp.allclose(out_col, ref, rtol=1e-4, atol=1e-4), (
        "f32 im2col max err:", float(jnp.max(jnp.abs(out_col - ref))))

    # bf16 compute + bf16-streamed x (default performance path).
    out_bf16 = jax.block_until_ready(bottleneck_pallas(x, kparams))
    assert out_bf16.shape == ref.shape
    assert jnp.allclose(out_bf16, ref, rtol=4e-2, atol=4e-2), (
        "bf16 path max err:", float(jnp.max(jnp.abs(out_bf16 - ref))))

    print("KERNEL_OK")
</pallas_src>

<mosaic_0001>
module attributes {stable_mosaic.version = 11 : i64} {
  func.func @bottleneck_kernel(%arg0: i32, %arg1: memref<64x16xf32, #tpu.memory_space<vmem>>, %arg2: memref<64x16xf32, #tpu.memory_space<vmem>>, %arg3: memref<16x4xf32, #tpu.memory_space<vmem>>, %arg4: memref<1x4xf32, #tpu.memory_space<vmem>>, %arg5: memref<1x4xf32, #tpu.memory_space<vmem>>, %arg6: memref<9x4x4xf32, #tpu.memory_space<vmem>>, %arg7: memref<1x4xf32, #tpu.memory_space<vmem>>, %arg8: memref<1x4xf32, #tpu.memory_space<vmem>>, %arg9: memref<4x16xf32, #tpu.memory_space<vmem>>, %arg10: memref<1x16xf32, #tpu.memory_space<vmem>>, %arg11: memref<1x16xf32, #tpu.memory_space<vmem>>, %arg12: memref<64x16xf32, #tpu.memory_space<vmem>>, %arg13: memref<96x4xf32, #tpu.memory_space<vmem>>) attributes {dimension_semantics = [#tpu.dimension_semantics<parallel>], iteration_bounds = array<i64: 2>, scalar_prefetch = 0 : i64, scratch_operands = 1 : i64, tpu.core_type = #tpu.core_type<tc>, window_params = [{pipeline_mode = #tpu.pipeline_mode<synchronous>, transform_indices = @transform_0, window_bounds = array<i64: 64, 16>}, {transform_indices = @transform_1, window_bounds = array<i64: 64, 16>}, {pipeline_mode = #tpu.pipeline_mode<synchronous>, transform_indices = @transform_2, window_bounds = array<i64: 16, 4>}, {pipeline_mode = #tpu.pipeline_mode<synchronous>, transform_indices = @transform_3, window_bounds = array<i64: 1, 4>}, {pipeline_mode = #tpu.pipeline_mode<synchronous>, transform_indices = @transform_4, window_bounds = array<i64: 1, 4>}, {pipeline_mode = #tpu.pipeline_mode<synchronous>, transform_indices = @transform_5, window_bounds = array<i64: 9, 4, 4>}, {pipeline_mode = #tpu.pipeline_mode<synchronous>, transform_indices = @transform_6, window_bounds = array<i64: 1, 4>}, {pipeline_mode = #tpu.pipeline_mode<synchronous>, transform_indices = @transform_7, window_bounds = array<i64: 1, 4>}, {pipeline_mode = #tpu.pipeline_mode<synchronous>, transform_indices = @transform_8, window_bounds = array<i64: 4, 16>}, {pipeline_mode = #tpu.pipeline_mode<synchronous>, transform_indices = @transform_9, window_bounds = array<i64: 1, 16>}, {pipeline_mode = #tpu.pipeline_mode<synchronous>, transform_indices = @transform_10, window_bounds = array<i64: 1, 16>}, {transform_indices = @transform_11, window_bounds = array<i64: 64, 16>}]} {
    %c0_i32 = arith.constant 0 : i32
    %0 = arith.cmpi eq, %arg0, %c0_i32 : i32
    %1 = arith.extui %0 : i1 to i32
    %c0_i32_0 = arith.constant 0 : i32
    %2 = arith.cmpi ne, %1, %c0_i32_0 : i32
    scf.if %2 {
      %cst_87 = arith.constant 0.000000e+00 : f32
      %144 = vector.broadcast %cst_87 : f32 to vector<16x4xf32>
      %c0_88 = arith.constant 0 : index
      %c0_89 = arith.constant 0 : index
      %145 = vector.load %arg13[%c0_88, %c0_89] : memref<96x4xf32, #tpu.memory_space<vmem>>, vector<16x4xf32>
      tpu.vector_store %arg13[%c0_88, %c0_89], %144 {strides = array<i32>} : memref<96x4xf32, #tpu.memory_space<vmem>>, vector<16x4xf32>,
      %cst_90 = arith.constant 0.000000e+00 : f32
      %146 = vector.broadcast %cst_90 : f32 to vector<16x4xf32>
      %c80 = arith.constant 80 : index
      %c0_91 = arith.constant 0 : index
      %147 = vector.load %arg13[%c80, %c0_91] : memref<96x4xf32, #tpu.memory_space<vmem>>, vector<16x4xf32>
      tpu.vector_store %arg13[%c80, %c0_91], %146 {strides = array<i32>} : memref<96x4xf32, #tpu.memory_space<vmem>>, vector<16x4xf32>,
    } else {
    }
    %c0 = arith.constant 0 : index
    %c0_1 = arith.constant 0 : index
    %3 = vector.load %arg2[%c0, %c0_1] : memref<64x16xf32, #tpu.memory_space<vmem>>, vector<64x16xf32>
    %c0_2 = arith.constant 0 : index
    %c0_3 = arith.constant 0 : index
    %4 = vector.load %arg3[%c0_2, %c0_3] : memref<16x4xf32, #tpu.memory_space<vmem>>, vector<16x4xf32>
    %cst = arith.constant dense<0.000000e+00> : vector<64x4xf32>
    %5 = tpu.matmul %3, %4, %cst {dimension_numbers = #tpu.dot_dimension_numbers<[1], [0], [0], [1], [0, 0, 1, 1], [], []>} : vector<64x16xf32>, vector<16x4xf32>, vector<64x4xf32> -> vector<64x4xf32>
    %c0_4 = arith.constant 0 : index
    %c0_5 = arith.constant 0 : index
    %6 = vector.load %arg4[%c0_4, %c0_5] : memref<1x4xf32, #tpu.memory_space<vmem>>, vector<1x4xf32>
    %7 = vector.broadcast %6 : vector<1x4xf32> to vector<64x4xf32>
    %8 = arith.mulf %5, %7 : vector<64x4xf32>
    %c0_6 = arith.constant 0 : index
    %c0_7 = arith.constant 0 : index
    %9 = vector.load %arg5[%c0_6, %c0_7] : memref<1x4xf32, #tpu.memory_space<vmem>>, vector<1x4xf32>
    %10 = vector.broadcast %9 : vector<1x4xf32> to vector<64x4xf32>
    %11 = arith.addf %8, %10 : vector<64x4xf32>
    %cst_8 = arith.constant 0.000000e+00 : f32
    %12 = vector.broadcast %cst_8 : f32 to vector<64x4xf32>
    %13 = arith.maximumf %11, %12 : vector<64x4xf32>
    %c16 = arith.constant 16 : index
    %c0_9 = arith.constant 0 : index
    %14 = vector.load %arg13[%c16, %c0_9] : memref<96x4xf32, #tpu.memory_space<vmem>>, vector<64x4xf32>
    tpu.vector_store %arg13[%c16, %c0_9], %13 {strides = array<i32>} : memref<96x4xf32, #tpu.memory_space<vmem>>, vector<64x4xf32>,
    %c0_10 = arith.constant 0 : index
    %c0_11 = arith.constant 0 : index
    %15 = vector.load %arg1[%c0_10, %c0_11] : memref<64x16xf32, #tpu.memory_space<vmem>>, vector<64x16xf32>
    %c7 = arith.constant 7 : index
    %c0_12 = arith.constant 0 : index
    %16 = vector.load %arg13[%c7, %c0_12] : memref<96x4xf32, #tpu.memory_space<vmem>>, vector<64x4xf32>
    %17 = vector.extract_strided_slice %15 {offsets = [0, 0], sizes = [64, 1], strides = [1, 1]} : vector<64x16xf32> to vector<64x1xf32>
    %cst_13 = arith.constant 0.000000e+00 : f32
    %18 = vector.broadcast %cst_13 : f32 to vector<64x1xf32>
    %19 = arith.cmpf ogt, %17, %18 : vector<64x1xf32>
    %cst_14 = arith.constant 0.000000e+00 : f32
    %20 = vector.shape_cast %19 : vector<64x1xi1> to vector<64x1xi1>
    %21 = vector.broadcast %20 : vector<64x1xi1> to vector<64x4xi1>
    %22 = vector.broadcast %cst_14 : f32 to vector<64x4xf32>
    %23 = arith.select %21, %16, %22 : vector<64x4xi1>, vector<64x4xf32>
    %c0_15 = arith.constant 0 : index
    %c0_16 = arith.constant 0 : index
    %c0_17 = arith.constant 0 : index
    %24 = vector.load %arg6[%c0_15, %c0_16, %c0_17] : memref<9x4x4xf32, #tpu.memory_space<vmem>>, vector<1x4x4xf32>
    %25 = vector.shape_cast %24 : vector<1x4x4xf32> to vector<4x4xf32>
    %cst_18 = arith.constant dense<0.000000e+00> : vector<64x4xf32>
    %26 = tpu.matmul %23, %25, %cst_18 {dimension_numbers = #tpu.dot_dimension_numbers<[1], [0], [0], [1], [0, 0, 1, 1], [], []>} : vector<64x4xf32>, vector<4x4xf32>, vector<64x4xf32> -> vector<64x4xf32>
    %c8 = arith.constant 8 : index
    %c0_19 = arith.constant 0 : index
    %27 = vector.load %arg13[%c8, %c0_19] : memref<96x4xf32, #tpu.memory_space<vmem>>, vector<64x4xf32>
    %28 = vector.extract_strided_slice %15 {offsets = [0, 1], sizes = [64, 1], strides = [1, 1]} : vector<64x16xf32> to vector<64x1xf32>
    %cst_20 = arith.constant 0.000000e+00 : f32
    %29 = vector.broadcast %cst_20 : f32 to vector<64x1xf32>
    %30 = arith.cmpf ogt, %28, %29 : vector<64x1xf32>
    %cst_21 = arith.constant 0.000000e+00 : f32
    %31 = vector.shape_cast %30 : vector<64x1xi1> to vector<64x1xi1>
    %32 = vector.broadcast %31 : vector<64x1xi1> to vector<64x4xi1>
    %33 = vector.broadcast %cst_21 : f32 to vector<64x4xf32>
    %34 = arith.select %32, %27, %33 : vector<64x4xi1>, vector<64x4xf32>
    %c1 = arith.constant 1 : index
    %c0_22 = arith.constant 0 : index
    %c0_23 = arith.constant 0 : index
    %35 = vector.load %arg6[%c1, %c0_22, %c0_23] : memref<9x4x4xf32, #tpu.memory_space<vmem>>, vector<1x4x4xf32>
    %36 = vector.shape_cast %35 : vector<1x4x4xf32> to vector<4x4xf32>
    %cst_24 = arith.constant dense<0.000000e+00> : vector<64x4xf32>
    %37 = tpu.matmul %34, %36, %cst_24 {dimension_numbers = #tpu.dot_dimension_numbers<[1], [0], [0], [1], [0, 0, 1, 1], [], []>} : vector<64x4xf32>, vector<4x4xf32>, vector<64x4xf32> -> vector<64x4xf32>
    %38 = arith.addf %26, %37 : vector<64x4xf32>
    %c9 = arith.constant 9 : index
    %c0_25 = arith.constant 0 : index
    %39 = vector.load %arg13[%c9, %c0_25] : memref<96x4xf32, #tpu.memory_space<vmem>>, vector<64x4xf32>
    %40 = vector.extract_strided_slice %15 {offsets = [0, 2], sizes = [64, 1], strides = [1, 1]} : vector<64x16xf32> to vector<64x1xf32>
    %cst_26 = arith.constant 0.000000e+00 : f32
    %41 = vector.broadcast %cst_26 : f32 to vector<64x1xf32>
    %42 = arith.cmpf ogt, %40, %41 : vector<64x1xf32>
    %cst_27 = arith.constant 0.000000e+00 : f32
    %43 = vector.shape_cast %42 : vector<64x1xi1> to vector<64x1xi1>
    %44 = vector.broadcast %43 : vector<64x1xi1> to vector<64x4xi1>
    %45 = vector.broadcast %cst_27 : f32 to vector<64x4xf32>
    %46 = arith.select %44, %39, %45 : vector<64x4xi1>, vector<64x4xf32>
    %c2 = arith.constant 2 : index
    %c0_28 = arith.constant 0 : index
    %c0_29 = arith.constant 0 : index
    %47 = vector.load %arg6[%c2, %c0_28, %c0_29] : memref<9x4x4xf32, #tpu.memory_space<vmem>>, vector<1x4x4xf32>
    %48 = vector.shape_cast %47 : vector<1x4x4xf32> to vector<4x4xf32>
    %cst_30 = arith.constant dense<0.000000e+00> : vector<64x4xf32>
    %49 = tpu.matmul %46, %48, %cst_30 {dimension_numbers = #tpu.dot_dimension_numbers<[1], [0], [0], [1], [0, 0, 1, 1], [], []>} : vector<64x4xf32>, vector<4x4xf32>, vector<64x4xf32> -> vector<64x4xf32>
    %50 = arith.addf %38, %49 : vector<64x4xf32>
    %c15 = arith.constant 15 : index
    %c0_31 = arith.constant 0 : index
    %51 = vector.load %arg13[%c15, %c0_31] : memref<96x4xf32, #tpu.memory_space<vmem>>, vector<64x4xf32>
    %52 = vector.extract_strided_slice %15 {offsets = [0, 3], sizes = [64, 1], strides = [1, 1]} : vector<64x16xf32> to vector<64x1xf32>
    %cst_32 = arith.constant 0.000000e+00 : f32
    %53 = vector.broadcast %cst_32 : f32 to vector<64x1xf32>
    %54 = arith.cmpf ogt, %52, %53 : vector<64x1xf32>
    %cst_33 = arith.constant 0.000000e+00 : f32
    %55 = vector.shape_cast %54 : vector<64x1xi1> to vector<64x1xi1>
    %56 = vector.broadcast %55 : vector<64x1xi1> to vector<64x4xi1>
    %57 = vector.broadcast %cst_33 : f32 to vector<64x4xf32>
    %58 = arith.select %56, %51, %57 : vector<64x4xi1>, vector<64x4xf32>
    %c3 = arith.constant 3 : index
    %c0_34 = arith.constant 0 : index
    %c0_35 = arith.constant 0 : index
    %59 = vector.load %arg6[%c3, %c0_34, %c0_35] : memref<9x4x4xf32, #tpu.memory_space<vmem>>, vector<1x4x4xf32>
    %60 = vector.shape_cast %59 : vector<1x4x4xf32> to vector<4x4xf32>
    %cst_36 = arith.constant dense<0.000000e+00> : vector<64x4xf32>
    %61 = tpu.matmul %58, %60, %cst_36 {dimension_numbers = #tpu.dot_dimension_numbers<[1], [0], [0], [1], [0, 0, 1, 1], [], []>} : vector<64x4xf32>, vector<4x4xf32>, vector<64x4xf32> -> vector<64x4xf32>
    %62 = arith.addf %50, %61 : vector<64x4xf32>
    %c16_37 = arith.constant 16 : index
    %c0_38 = arith.constant 0 : index
    %63 = vector.load %arg13[%c16_37, %c0_38] : memref<96x4xf32, #tpu.memory_space<vmem>>, vector<64x4xf32>
    %64 = vector.extract_strided_slice %15 {offsets = [0, 4], sizes = [64, 1], strides = [1, 1]} : vector<64x16xf32> to vector<64x1xf32>
    %cst_39 = arith.constant 0.000000e+00 : f32
    %65 = vector.broadcast %cst_39 : f32 to vector<64x1xf32>
    %66 = arith.cmpf ogt, %64, %65 : vector<64x1xf32>
    %cst_40 = arith.constant 0.000000e+00 : f32
    %67 = vector.shape_cast %66 : vector<64x1xi1> to vector<64x1xi1>
    %68 = vector.broadcast %67 : vector<64x1xi1> to vector<64x4xi1>
    %69 = vector.broadcast %cst_40 : f32 to vector<64x4xf32>
    %70 = arith.select %68, %63, %69 : vector<64x4xi1>, vector<64x4xf32>
    %c4 = arith.constant 4 : index
    %c0_41 = arith.constant 0 : index
    %c0_42 = arith.constant 0 : index
    %71 = vector.load %arg6[%c4, %c0_41, %c0_42] : memref<9x4x4xf32, #tpu.memory_space<vmem>>, vector<1x4x4xf32>
    %72 = vector.shape_cast %71 : vector<1x4x4xf32> to vector<4x4xf32>
    %cst_43 = arith.constant dense<0.000000e+00> : vector<64x4xf32>
    %73 = tpu.matmul %70, %72, %cst_43 {dimension_numbers = #tpu.dot_dimension_numbers<[1], [0], [0], [1], [0, 0, 1, 1], [], []>} : vector<64x4xf32>, vector<4x4xf32>, vector<64x4xf32> -> vector<64x4xf32>
    %74 = arith.addf %62, %73 : vector<64x4xf32>
    %c17 = arith.constant 17 : index
    %c0_44 = arith.constant 0 : index
    %75 = vector.load %arg13[%c17, %c0_44] : memref<96x4xf32, #tpu.memory_space<vmem>>, vector<64x4xf32>
    %76 = vector.extract_strided_slice %15 {offsets = [0, 5], sizes = [64, 1], strides = [1, 1]} : vector<64x16xf32> to vector<64x1xf32>
    %cst_45 = arith.constant 0.000000e+00 : f32
    %77 = vector.broadcast %cst_45 : f32 to vector<64x1xf32>
    %78 = arith.cmpf ogt, %76, %77 : vector<64x1xf32>
    %cst_46 = arith.constant 0.000000e+00 : f32
    %79 = vector.shape_cast %78 : vector<64x1xi1> to vector<64x1xi1>
    %80 = vector.broadcast %79 : vector<64x1xi1> to vector<64x4xi1>
    %81 = vector.broadcast %cst_46 : f32 to vector<64x4xf32>
    %82 = arith.select %80, %75, %81 : vector<64x4xi1>, vector<64x4xf32>
    %c5 = arith.constant 5 : index
    %c0_47 = arith.constant 0 : index
    %c0_48 = arith.constant 0 : index
    %83 = vector.load %arg6[%c5, %c0_47, %c0_48] : memref<9x4x4xf32, #tpu.memory_space<vmem>>, vector<1x4x4xf32>
    %84 = vector.shape_cast %83 : vector<1x4x4xf32> to vector<4x4xf32>
    %cst_49 = arith.constant dense<0.000000e+00> : vector<64x4xf32>
    %85 = tpu.matmul %82, %84, %cst_49 {dimension_numbers = #tpu.dot_dimension_numbers<[1], [0], [0], [1], [0, 0, 1, 1], [], []>} : vector<64x4xf32>, vector<4x4xf32>, vector<64x4xf32> -> vector<64x4xf32>
    %86 = arith.addf %74, %85 : vector<64x4xf32>
    %c23 = arith.constant 23 : index
    %c0_50 = arith.constant 0 : index
    %87 = vector.load %arg13[%c23, %c0_50] : memref<96x4xf32, #tpu.memory_space<vmem>>, vector<64x4xf32>
    %88 = vector.extract_strided_slice %15 {offsets = [0, 6], sizes = [64, 1], strides = [1, 1]} : vector<64x16xf32> to vector<64x1xf32>
    %cst_51 = arith.constant 0.000000e+00 : f32
    %89 = vector.broadcast %cst_51 : f32 to vector<64x1xf32>
    %90 = arith.cmpf ogt, %88, %89 : vector<64x1xf32>
    %cst_52 = arith.constant 0.000000e+00 : f32
    %91 = vector.shape_cast %90 : vector<64x1xi1> to vector<64x1xi1>
    %92 = vector.broadcast %91 : vector<64x1xi1> to vector<64x4xi1>
    %93 = vector.broadcast %cst_52 : f32 to vector<64x4xf32>
    %94 = arith.select %92, %87, %93 : vector<64x4xi1>, vector<64x4xf32>
    %c6 = arith.constant 6 : index
    %c0_53 = arith.constant 0 : index
    %c0_54 = arith.constant 0 : index
    %95 = vector.load %arg6[%c6, %c0_53, %c0_54] : memref<9x4x4xf32, #tpu.memory_space<vmem>>, vector<1x4x4xf32>
    %96 = vector.shape_cast %95 : vector<1x4x4xf32> to vector<4x4xf32>
    %cst_55 = arith.constant dense<0.000000e+00> : vector<64x4xf32>
    %97 = tpu.matmul %94, %96, %cst_55 {dimension_numbers = #tpu.dot_dimension_numbers<[1], [0], [0], [1], [0, 0, 1, 1], [], []>} : vector<64x4xf32>, vector<4x4xf32>, vector<64x4xf32> -> vector<64x4xf32>
    %98 = arith.addf %86, %97 : vector<64x4xf32>
    %c24 = arith.constant 24 : index
    %c0_56 = arith.constant 0 : index
    %99 = vector.load %arg13[%c24, %c0_56] : memref<96x4xf32, #tpu.memory_space<vmem>>, vector<64x4xf32>
    %100 = vector.extract_strided_slice %15 {offsets = [0, 7], sizes = [64, 1], strides = [1, 1]} : vector<64x16xf32> to vector<64x1xf32>
    %cst_57 = arith.constant 0.000000e+00 : f32
    %101 = vector.broadcast %cst_57 : f32 to vector<64x1xf32>
    %102 = arith.cmpf ogt, %100, %101 : vector<64x1xf32>
    %cst_58 = arith.constant 0.000000e+00 : f32
    %103 = vector.shape_cast %102 : vector<64x1xi1> to vector<64x1xi1>
    %104 = vector.broadcast %103 : vector<64x1xi1> to vector<64x4xi1>
    %105 = vector.broadcast %cst_58 : f32 to vector<64x4xf32>
    %106 = arith.select %104, %99, %105 : vector<64x4xi1>, vector<64x4xf32>
    %c7_59 = arith.constant 7 : index
    %c0_60 = arith.constant 0 : index
    %c0_61 = arith.constant 0 : index
    %107 = vector.load %arg6[%c7_59, %c0_60, %c0_61] : memref<9x4x4xf32, #tpu.memory_space<vmem>>, vector<1x4x4xf32>
    %108 = vector.shape_cast %107 : vector<1x4x4xf32> to vector<4x4xf32>
    %cst_62 = arith.constant dense<0.000000e+00> : vector<64x4xf32>
    %109 = tpu.matmul %106, %108, %cst_62 {dimension_numbers = #tpu.dot_dimension_numbers<[1], [0], [0], [1], [0, 0, 1, 1], [], []>} : vector<64x4xf32>, vector<4x4xf32>, vector<64x4xf32> -> vector<64x4xf32>
    %110 = arith.addf %98, %109 : vector<64x4xf32>
    %c25 = arith.constant 25 : index
    %c0_63 = arith.constant 0 : index
    %111 = vector.load %arg13[%c25, %c0_63] : memref<96x4xf32, #tpu.memory_space<vmem>>, vector<64x4xf32>
    %112 = vector.extract_strided_slice %15 {offsets = [0, 8], sizes = [64, 1], strides = [1, 1]} : vector<64x16xf32> to vector<64x1xf32>
    %cst_64 = arith.constant 0.000000e+00 : f32
    %113 = vector.broadcast %cst_64 : f32 to vector<64x1xf32>
    %114 = arith.cmpf ogt, %112, %113 : vector<64x1xf32>
    %cst_65 = arith.constant 0.000000e+00 : f32
    %115 = vector.shape_cast %114 : vector<64x1xi1> to vector<64x1xi1>
    %116 = vector.broadcast %115 : vector<64x1xi1> to vector<64x4xi1>
    %117 = vector.broadcast %cst_65 : f32 to vector<64x4xf32>
    %118 = arith.select %116, %111, %117 : vector<64x4xi1>, vector<64x4xf32>
    %c8_66 = arith.constant 8 : index
    %c0_67 = arith.constant 0 : index
    %c0_68 = arith.constant 0 : index
    %119 = vector.load %arg6[%c8_66, %c0_67, %c0_68] : memref<9x4x4xf32, #tpu.memory_space<vmem>>, vector<1x4x4xf32>
    %120 = vector.shape_cast %119 : vector<1x4x4xf32> to vector<4x4xf32>
    %cst_69 = arith.constant dense<0.000000e+00> : vector<64x4xf32>
    %121 = tpu.matmul %118, %120, %cst_69 {dimension_numbers = #tpu.dot_dimension_numbers<[1], [0], [0], [1], [0, 0, 1, 1], [], []>} : vector<64x4xf32>, vector<4x4xf32>, vector<64x4xf32> -> vector<64x4xf32>
    %122 = arith.addf %110, %121 : vector<64x4xf32>
    %c0_70 = arith.constant 0 : index
    %c0_71 = arith.constant 0 : index
    %123 = vector.load %arg7[%c0_70, %c0_71] : memref<1x4xf32, #tpu.memory_space<vmem>>, vector<1x4xf32>
    %124 = vector.broadcast %123 : vector<1x4xf32> to vector<64x4xf32>
    %125 = arith.mulf %122, %124 : vector<64x4xf32>
    %c0_72 = arith.constant 0 : index
    %c0_73 = arith.constant 0 : index
    %126 = vector.load %arg8[%c0_72, %c0_73] : memref<1x4xf32, #tpu.memory_space<vmem>>, vector<1x4xf32>
    %127 = vector.broadcast %126 : vector<1x4xf32> to vector<64x4xf32>
    %128 = arith.addf %125, %127 : vector<64x4xf32>
    %cst_74 = arith.constant 0.000000e+00 : f32
    %129 = vector.broadcast %cst_74 : f32 to vector<64x4xf32>
    %130 = arith.maximumf %128, %129 : vector<64x4xf32>
    %c0_75 = arith.constant 0 : index
    %c0_76 = arith.constant 0 : index
    %131 = vector.load %arg9[%c0_75, %c0_76] : memref<4x16xf32, #tpu.memory_space<vmem>>, vector<4x16xf32>
    %cst_77 = arith.constant dense<0.000000e+00> : vector<64x16xf32>
    %132 = tpu.matmul %130, %131, %cst_77 {dimension_numbers = #tpu.dot_dimension_numbers<[1], [0], [0], [1], [0, 0, 1, 1], [], []>} : vector<64x4xf32>, vector<4x16xf32>, vector<64x16xf32> -> vector<64x16xf32>
    %c0_78 = arith.constant 0 : index
    %c0_79 = arith.constant 0 : index
    %133 = vector.load %arg10[%c0_78, %c0_79] : memref<1x16xf32, #tpu.memory_space<vmem>>, vector<1x16xf32>
    %134 = vector.broadcast %133 : vector<1x16xf32> to vector<64x16xf32>
    %135 = arith.mulf %132, %134 : vector<64x16xf32>
    %c0_80 = arith.constant 0 : index
    %c0_81 = arith.constant 0 : index
    %136 = vector.load %arg11[%c0_80, %c0_81] : memref<1x16xf32, #tpu.memory_space<vmem>>, vector<1x16xf32>
    %137 = vector.broadcast %136 : vector<1x16xf32> to vector<64x16xf32>
    %138 = arith.addf %135, %137 : vector<64x16xf32>
    %c0_82 = arith.constant 0 : index
    %c0_83 = arith.constant 0 : index
    %139 = vector.load %arg2[%c0_82, %c0_83] : memref<64x16xf32, #tpu.memory_space<vmem>>, vector<64x16xf32>
    %140 = arith.addf %138, %139 : vector<64x16xf32>
    %cst_84 = arith.constant 0.000000e+00 : f32
    %141 = vector.broadcast %cst_84 : f32 to vector<64x16xf32>
    %142 = arith.maximumf %140, %141 : vector<64x16xf32>
    %c0_85 = arith.constant 0 : index
    %c0_86 = arith.constant 0 : index
    %143 = vector.load %arg12[%c0_85, %c0_86] : memref<64x16xf32, #tpu.memory_space<vmem>>, vector<64x16xf32>
    tpu.vector_store %arg12[%c0_85, %c0_86], %142 {strides = array<i32>} : memref<64x16xf32, #tpu.memory_space<vmem>>, vector<64x16xf32>,
    return
  }
  func.func @transform_0(%arg0: i32) -> (i32, i32) {
    %c0_i32 = arith.constant 0 : i32
    %c0_i32_0 = arith.constant 0 : i32
    %c0_i32_1 = arith.constant 0 : i32
    return %c0_i32, %c0_i32_0 : i32, i32
  }
  func.func @transform_1(%arg0: i32) -> (i32, i32) {
    %c0_i32 = arith.constant 0 : i32
    %c0_i32_0 = arith.constant 0 : i32
    return %arg0, %c0_i32 : i32, i32
  }
  func.func @transform_2(%arg0: i32) -> (i32, i32) {
    %c0_i32 = arith.constant 0 : i32
    %c0_i32_0 = arith.constant 0 : i32
    %c0_i32_1 = arith.constant 0 : i32
    return %c0_i32, %c0_i32_0 : i32, i32
  }
  func.func @transform_3(%arg0: i32) -> (i32, i32) {
    %c0_i32 = arith.constant 0 : i32
    %c0_i32_0 = arith.constant 0 : i32
    %c0_i32_1 = arith.constant 0 : i32
    return %c0_i32, %c0_i32_0 : i32, i32
  }
  func.func @transform_4(%arg0: i32) -> (i32, i32) {
    %c0_i32 = arith.constant 0 : i32
    %c0_i32_0 = arith.constant 0 : i32
    %c0_i32_1 = arith.constant 0 : i32
    return %c0_i32, %c0_i32_0 : i32, i32
  }
  func.func @transform_5(%arg0: i32) -> (i32, i32, i32) {
    %c0_i32 = arith.constant 0 : i32
    %c0_i32_0 = arith.constant 0 : i32
    %c0_i32_1 = arith.constant 0 : i32
    %c0_i32_2 = arith.constant 0 : i32
    return %c0_i32, %c0_i32_0, %c0_i32_1 : i32, i32, i32
  }
  func.func @transform_6(%arg0: i32) -> (i32, i32) {
    %c0_i32 = arith.constant 0 : i32
    %c0_i32_0 = arith.constant 0 : i32
    %c0_i32_1 = arith.constant 0 : i32
    return %c0_i32, %c0_i32_0 : i32, i32
  }
  func.func @transform_7(%arg0: i32) -> (i32, i32) {
    %c0_i32 = arith.constant 0 : i32
    %c0_i32_0 = arith.constant 0 : i32
    %c0_i32_1 = arith.constant 0 : i32
    return %c0_i32, %c0_i32_0 : i32, i32
  }
  func.func @transform_8(%arg0: i32) -> (i32, i32) {
    %c0_i32 = arith.constant 0 : i32
    %c0_i32_0 = arith.constant 0 : i32
    %c0_i32_1 = arith.constant 0 : i32
    return %c0_i32, %c0_i32_0 : i32, i32
  }
  func.func @transform_9(%arg0: i32) -> (i32, i32) {
    %c0_i32 = arith.constant 0 : i32
    %c0_i32_0 = arith.constant 0 : i32
    %c0_i32_1 = arith.constant 0 : i32
    return %c0_i32, %c0_i32_0 : i32, i32
  }
  func.func @transform_10(%arg0: i32) -> (i32, i32) {
    %c0_i32 = arith.constant 0 : i32
    %c0_i32_0 = arith.constant 0 : i32
    %c0_i32_1 = arith.constant 0 : i32
    return %c0_i32, %c0_i32_0 : i32, i32
  }
  func.func @transform_11(%arg0: i32) -> (i32, i32) {
    %c0_i32 = arith.constant 0 : i32
    %c0_i32_0 = arith.constant 0 : i32
    return %arg0, %c0_i32 : i32, i32
  }
}

</mosaic_0001>

<llo_original>
// kernel: tpu_custom_call.1
$region0: #{tpu_custom_call.1}
  #allocation0 [shape = 'u32[]', space=smem, size = 0x4, offset = 0x4, fixed_abs, tag = 'smem constant byte address 0x4 - core index']
  #allocation1 [shape = 'u32[144,128]{1,0:T(1,128)}', space=vmem, size = 0x12000, scoped, tag = 'internal scratch']
  #allocation2 [shape = 'f32[96,4]{1,0:T(8,128)}', space=vmem, size = 0xc000, scoped, tag = 'scratch operand']
  %s0 = inlined_call_operand.vmem [shape: f32[64,16], index: 0, kind: input, shape index: {}]
  %s1 = inlined_call_operand.vmem [shape: f32[128,16], index: 1, kind: input, shape index: {}]
  %s2 = inlined_call_operand.vmem [shape: f32[16,4], index: 2, kind: input, shape index: {}]
  %s3 = inlined_call_operand.vmem [shape: f32[1,4], index: 3, kind: input, shape index: {}]
  %s4 = inlined_call_operand.vmem [shape: f32[1,4], index: 4, kind: input, shape index: {}]
  %s5 = inlined_call_operand.vmem [shape: f32[9,4,4], index: 5, kind: input, shape index: {}]
  %s6 = inlined_call_operand.vmem [shape: f32[1,4], index: 6, kind: input, shape index: {}]
  %s7 = inlined_call_operand.vmem [shape: f32[1,4], index: 7, kind: input, shape index: {}]
  %s8 = inlined_call_operand.vmem [shape: f32[4,16], index: 8, kind: input, shape index: {}]
  %s9 = inlined_call_operand.vmem [shape: f32[1,16], index: 9, kind: input, shape index: {}]
  %s10 = inlined_call_operand.vmem [shape: f32[1,16], index: 10, kind: input, shape index: {}]
  %s11 = inlined_call_operand.vmem [shape: f32[128,16], index: 11, kind: output, shape index: {}]
  %s12 = sld [smem:[#allocation0]]
  $region81: #{tpu_custom_call.1} parent=0
    _
  %s14 = ssub.s32 1, %s12
  %s15 = scalar_select 0, %s14, %s12
  loop: start=0, step=1, limit=4
  $region2: #{tpu_custom_call.1} parent=0 // loop_pre_header
    _
  $region3: #{tpu_custom_call.1} parent=0 // loop_header
    %s17 = sphi 0, %s21
    %p18 = scmp.ge.s32.totalorder %s17, 4
    %s25 = sphi 0, %s25
    %s27 = sphi 0, %s25
    %s28 = sphi 0, %s27
    %s42 = sphi 0, %s28
    %s48 = sphi 0, %s50
    %s51 = sphi 0, %s48
    %s52 = sphi 0, %s51
    %s68 = sphi 0, %s52
    %s72 = sphi 0, %s72
    %s74 = sphi 0, %s72
    %s75 = sphi 0, %s74
    %s89 = sphi 0, %s75
    %s93 = sphi 0, %s93
    %s95 = sphi 0, %s93
    %s96 = sphi 0, %s95
    %s110 = sphi 0, %s96
    %s114 = sphi 0, %s114
    %s116 = sphi 0, %s114
    %s117 = sphi 0, %s116
    %s131 = sphi 0, %s117
    %s135 = sphi 0, %s135
    %s137 = sphi 0, %s135
    %s138 = sphi 0, %s137
    %s152 = sphi 0, %s138
    %s156 = sphi 0, %s156
    %s158 = sphi 0, %s156
    %s159 = sphi 0, %s158
    %s173 = sphi 0, %s159
    %s177 = sphi 0, %s177
    %s179 = sphi 0, %s177
    %s180 = sphi 0, %s179
    %s194 = sphi 0, %s180
    %s198 = sphi 0, %s198
    %s200 = sphi 0, %s198
    %s201 = sphi 0, %s200
    %s215 = sphi 0, %s201
    %s219 = sphi 0, %s219
    %s221 = sphi 0, %s219
    %s222 = sphi 0, %s221
    %s236 = sphi 0, %s222
    %s240 = sphi 0, %s240
    %s242 = sphi 0, %s240
    %s243 = sphi 0, %s242
    %s257 = sphi 0, %s243
    %s263 = sphi 0, %s265
    %s266 = sphi 0, %s263
    %s267 = sphi 0, %s266
    %s283 = sphi 0, %s267
  $region4: #{tpu_custom_call.1} parent=0 // loop_header_branch
    %20 = sbr.rel (%p18) target = $region8
  $region5: #{tpu_custom_call.1} parent=0 // loop_body
    %s22 = ssub.s32 %s17, 1
    %s23 = ssub.s32 %s17, 2
    %s24 = sadd.s32 %s17, 1
    %s26 = sadd.s32 %s25, 1
    %p29 = scmp.eq.s32.totalorder %s17, 1
    %p30 = scmp.ne.s32.totalorder %s25, %s27
    %p31 = scmp.eq.s32.totalorder %s17, 0
    %p32 = por %p30, %p31
    %p33 = scmp.ne.s32.totalorder %s25, %s27
    %p34 = scmp.eq.s32.totalorder %s22, 1
    %p35 = por %p33, %p34
    %p36 = scmp.ne.s32.totalorder %s27, %s28
    %p37 = scmp.eq.s32.totalorder %s22, 0
    %p38 = por %p36, %p37
    %p39 = scmp.ne.s32.totalorder %s27, %s28
    %p40 = scmp.eq.s32.totalorder %s23, 1
    %p41 = por %p39, %p40
    %p43 = scmp.ne.s32.totalorder %s28, %s42
    %p44 = scmp.eq.s32.totalorder %s23, 0
    %p45 = por %p43, %p44
    %s46 = ssub.s32 %s17, %s24
    %p47 = scmp.eq.s32.totalorder %s46, 0
    %s49 = sadd.s32 %s48, 1
    %s50 = scalar_select %p47, %s48, %s49
    %p53 = pneg %p47
    %p54 = scmp.eq.s32.totalorder %s17, 1
    %p55 = por %p53, %p54
    %p56 = scmp.ne.s32.totalorder %s48, %s51
    %p57 = scmp.eq.s32.totalorder %s17, 0
    %p58 = por %p56, %p57
    %p59 = scmp.ne.s32.totalorder %s48, %s51
    %p60 = scmp.eq.s32.totalorder %s22, 1
    %p61 = por %p59, %p60
    %p62 = scmp.ne.s32.totalorder %s51, %s52
    %p63 = scmp.eq.s32.totalorder %s22, 0
    %p64 = por %p62, %p63
    %p65 = scmp.ne.s32.totalorder %s51, %s52
    %p66 = scmp.eq.s32.totalorder %s23, 1
    %p67 = por %p65, %p66
    %p69 = scmp.ne.s32.totalorder %s52, %s68
    %p70 = scmp.eq.s32.totalorder %s23, 0
    %p71 = por %p69, %p70
    %s73 = sadd.s32 %s72, 1
    %p76 = scmp.eq.s32.totalorder %s17, 1
    %p77 = scmp.ne.s32.totalorder %s72, %s74
    %p78 = scmp.eq.s32.totalorder %s17, 0
    %p79 = por %p77, %p78
    %p80 = scmp.ne.s32.totalorder %s72, %s74
    %p81 = scmp.eq.s32.totalorder %s22, 1
    %p82 = por %p80, %p81
    %p83 = scmp.ne.s32.totalorder %s74, %s75
    %p84 = scmp.eq.s32.totalorder %s22, 0
    %p85 = por %p83, %p84
    %p86 = scmp.ne.s32.totalorder %s74, %s75
    %p87 = scmp.eq.s32.totalorder %s23, 1
    %p88 = por %p86, %p87
    %p90 = scmp.ne.s32.totalorder %s75, %s89
    %p91 = scmp.eq.s32.totalorder %s23, 0
    %p92 = por %p90, %p91
    %s94 = sadd.s32 %s93, 1
    %p97 = scmp.eq.s32.totalorder %s17, 1
    %p98 = scmp.ne.s32.totalorder %s93, %s95
    %p99 = scmp.eq.s32.totalorder %s17, 0
    %p100 = por %p98, %p99
    %p101 = scmp.ne.s32.totalorder %s93, %s95
    %p102 = scmp.eq.s32.totalorder %s22, 1
    %p103 = por %p101, %p102
    %p104 = scmp.ne.s32.totalorder %s95, %s96
    %p105 = scmp.eq.s32.totalorder %s22, 0
    %p106 = por %p104, %p105
    %p107 = scmp.ne.s32.totalorder %s95, %s96
    %p108 = scmp.eq.s32.totalorder %s23, 1
    %p109 = por %p107, %p108
    %p111 = scmp.ne.s32.totalorder %s96, %s110
    %p112 = scmp.eq.s32.totalorder %s23, 0
    %p113 = por %p111, %p112
    %s115 = sadd.s32 %s114, 1
    %p118 = scmp.eq.s32.totalorder %s17, 1
    %p119 = scmp.ne.s32.totalorder %s114, %s116
    %p120 = scmp.eq.s32.totalorder %s17, 0
    %p121 = por %p119, %p120
    %p122 = scmp.ne.s32.totalorder %s114, %s116
    %p123 = scmp.eq.s32.totalorder %s22, 1
    %p124 = por %p122, %p123
    %p125 = scmp.ne.s32.totalorder %s116, %s117
    %p126 = scmp.eq.s32.totalorder %s22, 0
    %p127 = por %p125, %p126
    %p128 = scmp.ne.s32.totalorder %s116, %s117
    %p129 = scmp.eq.s32.totalorder %s23, 1
    %p130 = por %p128, %p129
    %p132 = scmp.ne.s32.totalorder %s117, %s131
    %p133 = scmp.eq.s32.totalorder %s23, 0
    %p134 = por %p132, %p133
    %s136 = sadd.s32 %s135, 1
    %p139 = scmp.eq.s32.totalorder %s17, 1
    %p140 = scmp.ne.s32.totalorder %s135, %s137
    %p141 = scmp.eq.s32.totalorder %s17, 0
    %p142 = por %p140, %p141
    %p143 = scmp.ne.s32.totalorder %s135, %s137
    %p144 = scmp.eq.s32.totalorder %s22, 1
    %p145 = por %p143, %p144
    %p146 = scmp.ne.s32.totalorder %s137, %s138
    %p147 = scmp.eq.s32.totalorder %s22, 0
    %p148 = por %p146, %p147
    %p149 = scmp.ne.s32.totalorder %s137, %s138
    %p150 = scmp.eq.s32.totalorder %s23, 1
    %p151 = por %p149, %p150
    %p153 = scmp.ne.s32.totalorder %s138, %s152
    %p154 = scmp.eq.s32.totalorder %s23, 0
    %p155 = por %p153, %p154
    %s157 = sadd.s32 %s156, 1
    %p160 = scmp.eq.s32.totalorder %s17, 1
    %p161 = scmp.ne.s32.totalorder %s156, %s158
    %p162 = scmp.eq.s32.totalorder %s17, 0
    %p163 = por %p161, %p162
    %p164 = scmp.ne.s32.totalorder %s156, %s158
    %p165 = scmp.eq.s32.totalorder %s22, 1
    %p166 = por %p164, %p165
    %p167 = scmp.ne.s32.totalorder %s158, %s159
    %p168 = scmp.eq.s32.totalorder %s22, 0
    %p169 = por %p167, %p168
    %p170 = scmp.ne.s32.totalorder %s158, %s159
    %p171 = scmp.eq.s32.totalorder %s23, 1
    %p172 = por %p170, %p171
    %p174 = scmp.ne.s32.totalorder %s159, %s173
    %p175 = scmp.eq.s32.totalorder %s23, 0
    %p176 = por %p174, %p175
    %s178 = sadd.s32 %s177, 1
    %p181 = scmp.eq.s32.totalorder %s17, 1
    %p182 = scmp.ne.s32.totalorder %s177, %s179
    %p183 = scmp.eq.s32.totalorder %s17, 0
    %p184 = por %p182, %p183
    %p185 = scmp.ne.s32.totalorder %s177, %s179
    %p186 = scmp.eq.s32.totalorder %s22, 1
    %p187 = por %p185, %p186
    %p188 = scmp.ne.s32.totalorder %s179, %s180
    %p189 = scmp.eq.s32.totalorder %s22, 0
    %p190 = por %p188, %p189
    %p191 = scmp.ne.s32.totalorder %s179, %s180
    %p192 = scmp.eq.s32.totalorder %s23, 1
    %p193 = por %p191, %p192
    %p195 = scmp.ne.s32.totalorder %s180, %s194
    %p196 = scmp.eq.s32.totalorder %s23, 0
    %p197 = por %p195, %p196
    %s199 = sadd.s32 %s198, 1
    %p202 = scmp.eq.s32.totalorder %s17, 1
    %p203 = scmp.ne.s32.totalorder %s198, %s200
    %p204 = scmp.eq.s32.totalorder %s17, 0
    %p205 = por %p203, %p204
    %p206 = scmp.ne.s32.totalorder %s198, %s200
    %p207 = scmp.eq.s32.totalorder %s22, 1
    %p208 = por %p206, %p207
    %p209 = scmp.ne.s32.totalorder %s200, %s201
    %p210 = scmp.eq.s32.totalorder %s22, 0
    %p211 = por %p209, %p210
    %p212 = scmp.ne.s32.totalorder %s200, %s201
    %p213 = scmp.eq.s32.totalorder %s23, 1
    %p214 = por %p212, %p213
    %p216 = scmp.ne.s32.totalorder %s201, %s215
    %p217 = scmp.eq.s32.totalorder %s23, 0
    %p218 = por %p216, %p217
    %s220 = sadd.s32 %s219, 1
    %p223 = scmp.eq.s32.totalorder %s17, 1
    %p224 = scmp.ne.s32.totalorder %s219, %s221
    %p225 = scmp.eq.s32.totalorder %s17, 0
    %p226 = por %p224, %p225
    %p227 = scmp.ne.s32.totalorder %s219, %s221
    %p228 = scmp.eq.s32.totalorder %s22, 1
    %p229 = por %p227, %p228
    %p230 = scmp.ne.s32.totalorder %s221, %s222
    %p231 = scmp.eq.s32.totalorder %s22, 0
    %p232 = por %p230, %p231
    %p233 = scmp.ne.s32.totalorder %s221, %s222
    %p234 = scmp.eq.s32.totalorder %s23, 1
    %p235 = por %p233, %p234
    %p237 = scmp.ne.s32.totalorder %s222, %s236
    %p238 = scmp.eq.s32.totalorder %s23, 0
    %p239 = por %p237, %p238
    %s241 = sadd.s32 %s240, 1
    %p244 = scmp.eq.s32.totalorder %s17, 1
    %p245 = scmp.ne.s32.totalorder %s240, %s242
    %p246 = scmp.eq.s32.totalorder %s17, 0
    %p247 = por %p245, %p246
    %p248 = scmp.ne.s32.totalorder %s240, %s242
    %p249 = scmp.eq.s32.totalorder %s22, 1
    %p250 = por %p248, %p249
    %p251 = scmp.ne.s32.totalorder %s242, %s243
    %p252 = scmp.eq.s32.totalorder %s22, 0
    %p253 = por %p251, %p252
    %p254 = scmp.ne.s32.totalorder %s242, %s243
    %p255 = scmp.eq.s32.totalorder %s23, 1
    %p256 = por %p254, %p255
    %p258 = scmp.ne.s32.totalorder %s243, %s257
    %p259 = scmp.eq.s32.totalorder %s23, 0
    %p260 = por %p258, %p259
    %s261 = ssub.s32 %s17, %s24
    %p262 = scmp.eq.s32.totalorder %s261, 0
    %s264 = sadd.s32 %s263, 1
    %s265 = scalar_select %p262, %s263, %s264
    %p268 = pneg %p262
    %p269 = scmp.eq.s32.totalorder %s17, 1
    %p270 = por %p268, %p269
    %p271 = scmp.ne.s32.totalorder %s263, %s266
    %p272 = scmp.eq.s32.totalorder %s17, 0
    %p273 = por %p271, %p272
    %p274 = scmp.ne.s32.totalorder %s263, %s266
    %p275 = scmp.eq.s32.totalorder %s22, 1
    %p276 = por %p274, %p275
    %p277 = scmp.ne.s32.totalorder %s266, %s267
    %p278 = scmp.eq.s32.totalorder %s22, 0
    %p279 = por %p277, %p278
    %p280 = scmp.ne.s32.totalorder %s266, %s267
    %p281 = scmp.eq.s32.totalorder %s23, 1
    %p282 = por %p280, %p281
    %p284 = scmp.ne.s32.totalorder %s267, %s283
    %p285 = scmp.eq.s32.totalorder %s23, 0
    %p286 = por %p284, %p285
    %p287 = scmp.le.s32.totalorder 1, %s17
    %p288 = scmp.lt.s32.totalorder %s17, 3
    %p289 = pnand %p287, %p288
    %p290 = pneg %p289
    // Predicated region
    $region9: #{tpu_custom_call.1} parent=5 // pred_check
      _
    $region10: #{tpu_custom_call.1} parent=5 // pred_check_branch
      %292 = sbr.rel (%p289) target = $region12
    $region11: #{tpu_custom_call.1} parent=5 // pred_region
      %s293 = ssub.s32 %s17, 1
      // Predicated region
      $region13: #{tpu_custom_call.1} parent=11 // pred_check
        %p294 = pneg %p38
      $region14: #{tpu_custom_call.1} parent=11 // pred_check_branch
        %296 = sbr.rel (%p294) target = $region16
      $region15: #{tpu_custom_call.1} parent=11 // pred_region
        _
      $region16: #{tpu_custom_call.1} parent=11 // pred_fallthru
        _
      // Predicated region
      $region17: #{tpu_custom_call.1} parent=11 // pred_check
        %p297 = pneg %p85
      $region18: #{tpu_custom_call.1} parent=11 // pred_check_branch
        %299 = sbr.rel (%p297) target = $region20
      $region19: #{tpu_custom_call.1} parent=11 // pred_region
        _
      $region20: #{tpu_custom_call.1} parent=11 // pred_fallthru
        _
      // Predicated region
      $region21: #{tpu_custom_call.1} parent=11 // pred_check
        %p300 = pneg %p106
      $region22: #{tpu_custom_call.1} parent=11 // pred_check_branch
        %302 = sbr.rel (%p300) target = $region24
      $region23: #{tpu_custom_call.1} parent=11 // pred_region
        _
      $region24: #{tpu_custom_call.1} parent=11 // pred_fallthru
        _
      // Predicated region
      $region25: #{tpu_custom_call.1} parent=11 // pred_check
        %p303 = pneg %p127
      $region26: #{tpu_custom_call.1} parent=11 // pred_check_branch
        %305 = sbr.rel (%p303) target = $region28
      $region27: #{tpu_custom_call.1} parent=11 // pred_region
        _
      $region28: #{tpu_custom_call.1} parent=11 // pred_fallthru
        _
      // Predicated region
      $region29: #{tpu_custom_call.1} parent=11 // pred_check
        %p306 = pneg %p148
      $region30: #{tpu_custom_call.1} parent=11 // pred_check_branch
        %308 = sbr.rel (%p306) target = $region32
      $region31: #{tpu_custom_call.1} parent=11 // pred_region
        _
      $region32: #{tpu_custom_call.1} parent=11 // pred_fallthru
        _
      // Predicated region
      $region33: #{tpu_custom_call.1} parent=11 // pred_check
        %p309 = pneg %p169
      $region34: #{tpu_custom_call.1} parent=11 // pred_check_branch
        %311 = sbr.rel (%p309) target = $region36
      $region35: #{tpu_custom_call.1} parent=11 // pred_region
        _
      $region36: #{tpu_custom_call.1} parent=11 // pred_fallthru
        _
      // Predicated region
      $region37: #{tpu_custom_call.1} parent=11 // pred_check
        %p312 = pneg %p190
      $region38: #{tpu_custom_call.1} parent=11 // pred_check_branch
        %314 = sbr.rel (%p312) target = $region40
      $region39: #{tpu_custom_call.1} parent=11 // pred_region
        _
      $region40: #{tpu_custom_call.1} parent=11 // pred_fallthru
        _
      // Predicated region
      $region41: #{tpu_custom_call.1} parent=11 // pred_check
        %p315 = pneg %p211
      $region42: #{tpu_custom_call.1} parent=11 // pred_check_branch
        %317 = sbr.rel (%p315) target = $region44
      $region43: #{tpu_custom_call.1} parent=11 // pred_region
        _
      $region44: #{tpu_custom_call.1} parent=11 // pred_fallthru
        _
      // Predicated region
      $region45: #{tpu_custom_call.1} parent=11 // pred_check
        %p318 = pneg %p232
      $region46: #{tpu_custom_call.1} parent=11 // pred_check_branch
        %320 = sbr.rel (%p318) target = $region48
      $region47: #{tpu_custom_call.1} parent=11 // pred_region
        _
      $region48: #{tpu_custom_call.1} parent=11 // pred_fallthru
        _
      // Predicated region
      $region49: #{tpu_custom_call.1} parent=11 // pred_check
        %p321 = pneg %p253
      $region50: #{tpu_custom_call.1} parent=11 // pred_check_branch
        %323 = sbr.rel (%p321) target = $region52
      $region51: #{tpu_custom_call.1} parent=11 // pred_region
        _
      $region52: #{tpu_custom_call.1} parent=11 // pred_fallthru
        _
    $region12: #{tpu_custom_call.1} parent=5 // pred_fallthru
      _
    %p324 = scmp.lt.s32.totalorder %s17, 2
    // Predicated region
    $region53: #{tpu_custom_call.1} parent=5 // pred_check
      %p325 = pneg %p324
    $region54: #{tpu_custom_call.1} parent=5 // pred_check_branch
      %327 = sbr.rel (%p325) target = $region56
    $region55: #{tpu_custom_call.1} parent=5 // pred_region
      // Predicated region
      $region57: #{tpu_custom_call.1} parent=55 // pred_check
        %p328 = pneg %p58
      $region58: #{tpu_custom_call.1} parent=55 // pred_check_branch
        %330 = sbr.rel (%p328) target = $region60
      $region59: #{tpu_custom_call.1} parent=55 // pred_region
        %s331 = smul.u32 8, %s17
        %p332 = scmp.lt.s32.totalorder %s331, 15
        %s333 = scalar_select %p332, %s331, 15
        %s334 = smul.addr %s333, 8
        %s335 = scalar_lea.vmem %s1, %s334
        %s336 = smul.u32 8, %s17
      $region60: #{tpu_custom_call.1} parent=55 // pred_fallthru
        _
    $region56: #{tpu_custom_call.1} parent=5 // pred_fallthru
      _
    %p337 = scmp.le.s32.totalorder 1, %s17
    %p338 = scmp.lt.s32.totalorder %s17, 3
    %p339 = pnand %p337, %p338
    %p340 = pneg %p339
    // Predicated region
    $region61: #{tpu_custom_call.1} parent=5 // pred_check
      _
    $region62: #{tpu_custom_call.1} parent=5 // pred_check_branch
      %342 = sbr.rel (%p339) target = $region64
    $region63: #{tpu_custom_call.1} parent=5 // pred_region
      %s343 = ssub.s32 %s17, 1
      %p344 = pneg %p38
      %p345 = pneg %p35
      %s346 = smul.u32 8, %s22
      %p347 = scmp.lt.s32.totalorder %s346, 15
      %s348 = scalar_select %p347, %s346, 15
      %s349 = smul.addr %s348, 8
      %s350 = scalar_lea.vmem %s1, %s349
      %p351 = pneg %p64
      %p352 = pneg %p61
      %p353 = pneg %p85
      %p354 = pneg %p82
      %p355 = pneg %p106
      %p356 = pneg %p103
      %p357 = pneg %p127
      %p358 = pneg %p124
      %p359 = pneg %p148
      %p360 = pneg %p145
      %p361 = pneg %p169
      %p362 = pneg %p166
      %p363 = pneg %p190
      %p364 = pneg %p187
      %p365 = pneg %p211
      %p366 = pneg %p208
      %p367 = pneg %p232
      %p368 = pneg %p229
      %p369 = pneg %p253
      %p370 = pneg %p250
      %p371 = pneg %p279
      %p372 = pneg %p276
      %s373 = smul.u32 8, %s22
      %p374 = scmp.lt.s32.totalorder %s373, 15
      %s375 = scalar_select %p374, %s373, 15
      %s376 = smul.addr %s375, 8
      %s377 = scalar_lea.vmem %s11, %s376
      %s378 = smul.u32 8, %s22
      %p379 = scmp.lt.s32.totalorder %s378, 15
      %s380 = scalar_select %p379, %s378, 15
      %s381 = smul.addr %s380, 8
      %s382 = scalar_lea.vmem %s1, %s381
      %s383 = smul.u32 8, %s22
      %s384 = smul.u32 8, %s22
      %p385 = scmp.lt.s32.totalorder %s384, 15
      %s386 = scalar_select %p385, %s384, 15
      %s387 = smul.addr %s386, 8
      %s388 = scalar_lea.vmem %s11, %s387
      %s389 = smul.u32 8, %s22
      %p390 = scmp.eq.s32.totalorder %s22, 0
      // Predicated region
      $region65: #{tpu_custom_call.1} parent=63 // pred_check
        %p391 = pneg %p390
      $region66: #{tpu_custom_call.1} parent=63 // pred_check_branch
        %393 = sbr.rel (%p391) target = $region68
      $region67: #{tpu_custom_call.1} parent=63 // pred_region
        %vm394 = vcmask 31744
        %395 = vst.msk [vmem:[#allocation2] sm:$0xff] %vm394, 0.0
        %396 = vst.msk [vmem:[#allocation2 + $0x8] sm:$0xff] %vm394, 0.0
        %397 = vst.msk [vmem:[#allocation2 + $0x50] sm:$0xff] %vm394, 0.0
        %398 = vst.msk [vmem:[#allocation2 + $0x58] sm:$0xff] %vm394, 0.0
      $region68: #{tpu_custom_call.1} parent=63 // pred_fallthru
        _
      %v399 = vld [vmem:[%s382] sm:$0xff]
      %v400 = vld [vmem:[%s382 + $0x8] sm:$0xff]
      %v401 = vld [vmem:[%s382 + $0x10] sm:$0xff]
      %v402 = vld [vmem:[%s382 + $0x18] sm:$0xff]
      %v403 = vld [vmem:[%s382 + $0x20] sm:$0xff]
      %v404 = vld [vmem:[%s382 + $0x28] sm:$0xff]
      %v405 = vld [vmem:[%s382 + $0x30] sm:$0xff]
      %v406 = vld [vmem:[%s382 + $0x38] sm:$0xff]
      %v407 = vld [vmem:[%s2] sm:$0xff]
      %v408 = vld [vmem:[%s2 + $0x8] sm:$0xff]
      %vm409 = vcmask 130048
      %v411 = vsel %vm409, %v399, 0
      %v414 = vsel %vm409, %v400, 0
      %v417 = vsel %vm409, %v401, 0
      %v420 = vsel %vm409, %v402, 0
      %v423 = vsel %vm409, %v403, 0
      %v426 = vsel %vm409, %v404, 0
      %v429 = vsel %vm409, %v405, 0
      %v432 = vsel %vm409, %v406, 0
      %434 = vmatprep.subr.mxu0 0.0
      %435 = vmatpush1.msra.mxu0 0.0
      %436 = vmatprep.subr.mxu0 0.0
      %437 = vmatpush1.msra.mxu0 0.0
      %438 = vmatprep.subr.mxu0 0.0
      %439 = vmatpush1.msra.mxu0 0.0
      %440 = vmatprep.subr.mxu0 0.0
      %441 = vmatpush1.msra.mxu0 0.0
      %442 = vmatprep.subr.mxu0 0.0
      %443 = vmatpush1.msra.mxu0 0.0
      %444 = vmatprep.subr.mxu0 0.0
      %445 = vmatpush1.msra.mxu0 0.0
      %446 = vmatprep.subr.mxu0 0.0
      %447 = vmatpush1.msra.mxu0 0.0
      %448 = vmatprep.subr.mxu0 0.0
      %449 = vmatpush1.msra.mxu0 0.0
      %450 = vmatprep.subr.mxu0 0.0
      %451 = vmatpush1.msra.mxu0 0.0
      %452 = vmatprep.subr.mxu0 0.0
      %453 = vmatpush1.msra.mxu0 0.0
      %454 = vmatprep.subr.mxu0 0.0
      %455 = vmatpush1.msra.mxu0 0.0
      %456 = vmatprep.subr.mxu0 0.0
      %457 = vmatpush1.msra.mxu0 0.0
      %458 = vmatprep.subr.mxu0 0.0
      %459 = vmatpush1.msra.mxu0 0.0
      %460 = vmatprep.subr.mxu0 0.0
      %461 = vmatpush1.msra.mxu0 0.0
      %462 = vmatprep.subr.mxu0 0.0
      %463 = vmatpush1.msra.mxu0 %v408
      %464 = vmatprep.subr.mxu0 0.0
      %465 = vmatpush1.msra.mxu0 %v407
      %466 = vmatprep.subr.mxu0 0.0
      %467 = vmatpush2.msra.mxu0 0.0
      %468 = vmatprep.subr.mxu0 0.0
      %469 = vmatpush2.msra.mxu0 0.0
      %470 = vmatprep.subr.mxu0 0.0
      %471 = vmatpush2.msra.mxu0 0.0
      %472 = vmatprep.subr.mxu0 0.0
      %473 = vmatpush2.msra.mxu0 0.0
      %474 = vmatprep.subr.mxu0 0.0
      %475 = vmatpush2.msra.mxu0 0.0
      %476 = vmatprep.subr.mxu0 0.0
      %477 = vmatpush2.msra.mxu0 0.0
      %478 = vmatprep.subr.mxu0 0.0
      %479 = vmatpush2.msra.mxu0 0.0
      %480 = vmatprep.subr.mxu0 0.0
      %481 = vmatpush2.msra.mxu0 0.0
      %482 = vmatprep.subr.mxu0 0.0
      %483 = vmatpush2.msra.mxu0 0.0
      %484 = vmatprep.subr.mxu0 0.0
      %485 = vmatpush2.msra.mxu0 0.0
      %486 = vmatprep.subr.mxu0 0.0
      %487 = vmatpush2.msra.mxu0 0.0
      %488 = vmatprep.subr.mxu0 0.0
      %489 = vmatpush2.msra.mxu0 0.0
      %490 = vmatprep.subr.mxu0 0.0
      %491 = vmatpush2.msra.mxu0 0.0
      %492 = vmatprep.subr.mxu0 0.0
      %493 = vmatpush2.msra.mxu0 0.0
      %494 = vmatprep.subr.mxu0 0.0
      %495 = vmatpush2.msra.mxu0 0.0
      %496 = vmatprep.subr.mxu0 0.0
      %497 = vmatpush2.msra.mxu0 0.0
      %498 = vmatprep.mubr.f32.mxu0 0.0
      %499 = vmatmul.mubr.f32.gmra.mxu0 %v411
      %v500 = vpop.f32.mrf.mxu0
      %v501 = vadd.f32 0.0, %v500
      %v502 = vpop.f32.mrf.mxu0
      %503 = vmatprep.mubr.f32.mxu0 0.0
      %504 = vmatmul.mubr.f32.gmra.mxu0 %v414
      %v505 = vpop.f32.mrf.mxu0
      %v506 = vadd.f32 0.0, %v505
      %v507 = vpop.f32.mrf.mxu0
      %508 = vmatprep.mubr.f32.mxu0 0.0
      %509 = vmatmul.mubr.f32.gmra.mxu0 %v417
      %v510 = vpop.f32.mrf.mxu0
      %v511 = vadd.f32 0.0, %v510
      %v512 = vpop.f32.mrf.mxu0
      %513 = vmatprep.mubr.f32.mxu0 0.0
      %514 = vmatmul.mubr.f32.gmra.mxu0 %v420
      %v515 = vpop.f32.mrf.mxu0
      %v516 = vadd.f32 0.0, %v515
      %v517 = vpop.f32.mrf.mxu0
      %518 = vmatprep.mubr.f32.mxu0 0.0
      %519 = vmatmul.mubr.f32.gmra.mxu0 %v423
      %v520 = vpop.f32.mrf.mxu0
      %v521 = vadd.f32 0.0, %v520
      %v522 = vpop.f32.mrf.mxu0
      %523 = vmatprep.mubr.f32.mxu0 0.0
      %524 = vmatmul.mubr.f32.gmra.mxu0 %v426
      %v525 = vpop.f32.mrf.mxu0
      %v526 = vadd.f32 0.0, %v525
      %v527 = vpop.f32.mrf.mxu0
      %528 = vmatprep.mubr.f32.mxu0 0.0
      %529 = vmatmul.mubr.f32.gmra.mxu0 %v429
      %v530 = vpop.f32.mrf.mxu0
      %v531 = vadd.f32 0.0, %v530
      %v532 = vpop.f32.mrf.mxu0
      %533 = vmatprep.mubr.f32.mxu0 0.0
      %534 = vmatmul.mubr.f32.gmra.mxu0 %v432
      %v535 = vpop.f32.mrf.mxu0
      %v536 = vadd.f32 0.0, %v535
      %v537 = vpop.f32.mrf.mxu0
      %538 = vdwg.mxu0
      %v539 = vld [vmem:[%s3] sm:$0x1]
      %v541 = vlaneseq
      %v542 = vshrl.u32 %v541, 7
      %v543 = vsub.s32 0, %v542
      %v544 = vrot.slane %v539, %v543
      %v546 = vmul.f32 %v501, %v544
      %v547 = vmul.f32 %v506, %v544
      %v548 = vmul.f32 %v511, %v544
      %v549 = vmul.f32 %v516, %v544
      %v550 = vmul.f32 %v521, %v544
      %v551 = vmul.f32 %v526, %v544
      %v552 = vmul.f32 %v531, %v544
      %v553 = vmul.f32 %v536, %v544
      %v554 = vld [vmem:[%s4] sm:$0x1]
      %v556 = vlaneseq
      %v557 = vshrl.u32 %v556, 7
      %v558 = vsub.s32 0, %v557
      %v559 = vrot.slane %v554, %v558
      %v561 = vadd.f32 %v546, %v559
      %v562 = vadd.f32 %v547, %v559
      %v563 = vadd.f32 %v548, %v559
      %v564 = vadd.f32 %v549, %v559
      %v565 = vadd.f32 %v550, %v559
      %v566 = vadd.f32 %v551, %v559
      %v567 = vadd.f32 %v552, %v559
      %v568 = vadd.f32 %v553, %v559
      %v569 = vmax.f32 %v561, 0.0
      %v570 = vmax.f32 %v562, 0.0
      %v571 = vmax.f32 %v563, 0.0
      %v572 = vmax.f32 %v564, 0.0
      %v573 = vmax.f32 %v565, 0.0
      %v574 = vmax.f32 %v566, 0.0
      %v575 = vmax.f32 %v567, 0.0
      %v576 = vmax.f32 %v568, 0.0
      %vm577 = vcmask 31744
      %578 = vst.msk [vmem:[#allocation2 + $0x10] sm:$0xff] %vm577, %v569
      %579 = vst.msk [vmem:[#allocation2 + $0x18] sm:$0xff] %vm577, %v570
      %580 = vst.msk [vmem:[#allocation2 + $0x20] sm:$0xff] %vm577, %v571
      %581 = vst.msk [vmem:[#allocation2 + $0x28] sm:$0xff] %vm577, %v572
      %582 = vst.msk [vmem:[#allocation2 + $0x30] sm:$0xff] %vm577, %v573
      %583 = vst.msk [vmem:[#allocation2 + $0x38] sm:$0xff] %vm577, %v574
      %584 = vst.msk [vmem:[#allocation2 + $0x40] sm:$0xff] %vm577, %v575
      %585 = vst.msk [vmem:[#allocation2 + $0x48] sm:$0xff] %vm577, %v576
      %v586 = vld [vmem:[%s0] sm:$0xff]
      %v587 = vld [vmem:[%s0 + $0x8] sm:$0xff]
      %v588 = vld [vmem:[%s0 + $0x10] sm:$0xff]
      %v589 = vld [vmem:[%s0 + $0x18] sm:$0xff]
      %v590 = vld [vmem:[%s0 + $0x20] sm:$0xff]
      %v591 = vld [vmem:[%s0 + $0x28] sm:$0xff]
      %v592 = vld [vmem:[%s0 + $0x30] sm:$0xff]
      %v593 = vld [vmem:[%s0 + $0x38] sm:$0xff]
      %v594 = vld [vmem:[#allocation2 + $0x7] sm:$0xff]
      %v595 = vld [vmem:[#allocation2 + $0xf] sm:$0xff]
      %v596 = vld [vmem:[#allocation2 + $0x17] sm:$0xff]
      %v597 = vld [vmem:[#allocation2 + $0x1f] sm:$0xff]
      %v598 = vld [vmem:[#allocation2 + $0x27] sm:$0xff]
      %v599 = vld [vmem:[#allocation2 + $0x2f] sm:$0xff]
      %v600 = vld [vmem:[#allocation2 + $0x37] sm:$0xff]
      %v601 = vld [vmem:[#allocation2 + $0x3f] sm:$0xff]
      %vm602 = vcmp.gt.f32.partialorder %v586, 0.0
      %vm603 = vcmp.gt.f32.partialorder %v587, 0.0
      %vm604 = vcmp.gt.f32.partialorder %v588, 0.0
      %vm605 = vcmp.gt.f32.partialorder %v589, 0.0
      %vm606 = vcmp.gt.f32.partialorder %v590, 0.0
      %vm607 = vcmp.gt.f32.partialorder %v591, 0.0
      %vm608 = vcmp.gt.f32.partialorder %v592, 0.0
      %vm609 = vcmp.gt.f32.partialorder %v593, 0.0
      %v610 = vsel %vm602, 1, 0
      %v611 = vsel %vm603, 1, 0
      %v612 = vsel %vm604, 1, 0
      %v613 = vsel %vm605, 1, 0
      %v614 = vsel %vm606, 1, 0
      %v615 = vsel %vm607, 1, 0
      %v616 = vsel %vm608, 1, 0
      %v617 = vsel %vm609, 1, 0
      %618 = vset.pattern.permute.xlu0 0
      %619 = vperm.xlu0 %618, %v610
      %v620 = vpop.permute.xlu0 %619
      %621 = vset.pattern.permute.xlu0 0
      %622 = vperm.xlu0 %621, %v611
      %v623 = vpop.permute.xlu0 %622
      %624 = vset.pattern.permute.xlu0 0
      %625 = vperm.xlu0 %624, %v612
      %v626 = vpop.permute.xlu0 %625
      %627 = vset.pattern.permute.xlu0 0
      %628 = vperm.xlu0 %627, %v613
      %v629 = vpop.permute.xlu0 %628
      %630 = vset.pattern.permute.xlu0 0
      %631 = vperm.xlu0 %630, %v614
      %v632 = vpop.permute.xlu0 %631
      %633 = vset.pattern.permute.xlu0 0
      %634 = vperm.xlu0 %633, %v615
      %v635 = vpop.permute.xlu0 %634
      %636 = vset.pattern.permute.xlu0 0
      %637 = vperm.xlu0 %636, %v616
      %v638 = vpop.permute.xlu0 %637
      %639 = vset.pattern.permute.xlu0 0
      %640 = vperm.xlu0 %639, %v617
      %v641 = vpop.permute.xlu0 %640
      %vm642 = vcmp.eq.s32.totalorder %v620, 1
      %vm643 = vcmp.eq.s32.totalorder %v623, 1
      %vm644 = vcmp.eq.s32.totalorder %v626, 1
      %vm645 = vcmp.eq.s32.totalorder %v629, 1
      %vm646 = vcmp.eq.s32.totalorder %v632, 1
      %vm647 = vcmp.eq.s32.totalorder %v635, 1
      %vm648 = vcmp.eq.s32.totalorder %v638, 1
      %vm649 = vcmp.eq.s32.totalorder %v641, 1
      %v650 = vsel %vm642, %v594, 0.0
      %v651 = vsel %vm643, %v595, 0.0
      %v652 = vsel %vm644, %v596, 0.0
      %v653 = vsel %vm645, %v597, 0.0
      %v654 = vsel %vm646, %v598, 0.0
      %v655 = vsel %vm647, %v599, 0.0
      %v656 = vsel %vm648, %v600, 0.0
      %v657 = vsel %vm649, %v601, 0.0
      %v658 = vld [vmem:[%s5] sm:$0xf]
      %v659 = vld [vmem:[#allocation2 + $0x8] sm:$0xff]
      %v660 = vld [vmem:[#allocation2 + $0x10] sm:$0xff]
      %v661 = vld [vmem:[#allocation2 + $0x18] sm:$0xff]
      %v662 = vld [vmem:[#allocation2 + $0x20] sm:$0xff]
      %v663 = vld [vmem:[#allocation2 + $0x28] sm:$0xff]
      %v664 = vld [vmem:[#allocation2 + $0x30] sm:$0xff]
      %v665 = vld [vmem:[#allocation2 + $0x38] sm:$0xff]
      %v666 = vld [vmem:[#allocation2 + $0x40] sm:$0xff]
      %667 = vset.pattern.permute.xlu0 1
      %668 = vperm.xlu0 %667, %v610
      %v669 = vpop.permute.xlu0 %668
      %670 = vset.pattern.permute.xlu0 1
      %671 = vperm.xlu0 %670, %v611
      %v672 = vpop.permute.xlu0 %671
      %673 = vset.pattern.permute.xlu0 1
      %674 = vperm.xlu0 %673, %v612
      %v675 = vpop.permute.xlu0 %674
      %676 = vset.pattern.permute.xlu0 1
      %677 = vperm.xlu0 %676, %v613
      %v678 = vpop.permute.xlu0 %677
      %679 = vset.pattern.permute.xlu0 1
      %680 = vperm.xlu0 %679, %v614
      %v681 = vpop.permute.xlu0 %680
      %682 = vset.pattern.permute.xlu0 1
      %683 = vperm.xlu0 %682, %v615
      %v684 = vpop.permute.xlu0 %683
      %685 = vset.pattern.permute.xlu0 1
      %686 = vperm.xlu0 %685, %v616
      %v687 = vpop.permute.xlu0 %686
      %688 = vset.pattern.permute.xlu0 1
      %689 = vperm.xlu0 %688, %v617
      %v690 = vpop.permute.xlu0 %689
      %vm691 = vcmp.eq.s32.totalorder %v669, 1
      %vm692 = vcmp.eq.s32.totalorder %v672, 1
      %vm693 = vcmp.eq.s32.totalorder %v675, 1
      %vm694 = vcmp.eq.s32.totalorder %v678, 1
      %vm695 = vcmp.eq.s32.totalorder %v681, 1
      %vm696 = vcmp.eq.s32.totalorder %v684, 1
      %vm697 = vcmp.eq.s32.totalorder %v687, 1
      %vm698 = vcmp.eq.s32.totalorder %v690, 1
      %v699 = vsel %vm691, %v659, 0.0
      %v700 = vsel %vm692, %v660, 0.0
      %v701 = vsel %vm693, %v661, 0.0
      %v702 = vsel %vm694, %v662, 0.0
      %v703 = vsel %vm695, %v663, 0.0
      %v704 = vsel %vm696, %v664, 0.0
      %v705 = vsel %vm697, %v665, 0.0
      %v706 = vsel %vm698, %v666, 0.0
      %s707 = scalar_lea.vmem %s5, 4
      %v708 = vld [vmem:[%s707] sm:$0xf]
      %v710 = vsel %vm577, %v699, 0
      %v713 = vsel %vm577, %v700, 0
      %v716 = vsel %vm577, %v701, 0
      %v719 = vsel %vm577, %v702, 0
      %v722 = vsel %vm577, %v703, 0
      %v725 = vsel %vm577, %v704, 0
      %v728 = vsel %vm577, %v705, 0
      %v731 = vsel %vm577, %v706, 0
      %vm733 = vcmask 1043456
      %v735 = vsel %vm733, %v708, 0
      %737 = vmatprep.subr.mxu0 0.0
      %738 = vmatpush1.msra.mxu0 0.0
      %739 = vmatprep.subr.mxu0 0.0
      %740 = vmatpush1.msra.mxu0 0.0
      %741 = vmatprep.subr.mxu0 0.0
      %742 = vmatpush1.msra.mxu0 0.0
      %743 = vmatprep.subr.mxu0 0.0
      %744 = vmatpush1.msra.mxu0 0.0
      %745 = vmatprep.subr.mxu0 0.0
      %746 = vmatpush1.msra.mxu0 0.0
      %747 = vmatprep.subr.mxu0 0.0
      %748 = vmatpush1.msra.mxu0 0.0
      %749 = vmatprep.subr.mxu0 0.0
      %750 = vmatpush1.msra.mxu0 0.0
      %751 = vmatprep.subr.mxu0 0.0
      %752 = vmatpush1.msra.mxu0 0.0
      %753 = vmatprep.subr.mxu0 0.0
      %754 = vmatpush1.msra.mxu0 0.0
      %755 = vmatprep.subr.mxu0 0.0
      %756 = vmatpush1.msra.mxu0 0.0
      %757 = vmatprep.subr.mxu0 0.0
      %758 = vmatpush1.msra.mxu0 0.0
      %759 = vmatprep.subr.mxu0 0.0
      %760 = vmatpush1.msra.mxu0 0.0
      %761 = vmatprep.subr.mxu0 0.0
      %762 = vmatpush1.msra.mxu0 0.0
      %763 = vmatprep.subr.mxu0 0.0
      %764 = vmatpush1.msra.mxu0 0.0
      %765 = vmatprep.subr.mxu0 0.0
      %766 = vmatpush1.msra.mxu0 0.0
      %767 = vmatprep.subr.mxu0 0.0
      %768 = vmatpush1.msra.mxu0 %v735
      %769 = vmatprep.subr.mxu0 0.0
      %770 = vmatpush2.msra.mxu0 0.0
      %771 = vmatprep.subr.mxu0 0.0
      %772 = vmatpush2.msra.mxu0 0.0
      %773 = vmatprep.subr.mxu0 0.0
      %774 = vmatpush2.msra.mxu0 0.0
      %775 = vmatprep.subr.mxu0 0.0
      %776 = vmatpush2.msra.mxu0 0.0
      %777 = vmatprep.subr.mxu0 0.0
      %778 = vmatpush2.msra.mxu0 0.0
      %779 = vmatprep.subr.mxu0 0.0
      %780 = vmatpush2.msra.mxu0 0.0
      %781 = vmatprep.subr.mxu0 0.0
      %782 = vmatpush2.msra.mxu0 0.0
      %783 = vmatprep.subr.mxu0 0.0
      %784 = vmatpush2.msra.mxu0 0.0
      %785 = vmatprep.subr.mxu0 0.0
      %786 = vmatpush2.msra.mxu0 0.0
      %787 = vmatprep.subr.mxu0 0.0
      %788 = vmatpush2.msra.mxu0 0.0
      %789 = vmatprep.subr.mxu0 0.0
      %790 = vmatpush2.msra.mxu0 0.0
      %791 = vmatprep.subr.mxu0 0.0
      %792 = vmatpush2.msra.mxu0 0.0
      %793 = vmatprep.subr.mxu0 0.0
      %794 = vmatpush2.msra.mxu0 0.0
      %795 = vmatprep.subr.mxu0 0.0
      %796 = vmatpush2.msra.mxu0 0.0
      %797 = vmatprep.subr.mxu0 0.0
      %798 = vmatpush2.msra.mxu0 0.0
      %799 = vmatprep.subr.mxu0 0.0
      %800 = vmatpush2.msra.mxu0 0.0
      %801 = vmatprep.mubr.f32.mxu0 0.0
      %802 = vmatmul.mubr.f32.gmra.mxu0 %v710
      %v803 = vpop.f32.mrf.mxu0
      %v804 = vadd.f32 0.0, %v803
      %v805 = vpop.f32.mrf.mxu0
      %806 = vmatprep.mubr.f32.mxu0 0.0
      %807 = vmatmul.mubr.f32.gmra.mxu0 %v713
      %v808 = vpop.f32.mrf.mxu0
      %v809 = vadd.f32 0.0, %v808
      %v810 = vpop.f32.mrf.mxu0
      %811 = vmatprep.mubr.f32.mxu0 0.0
      %812 = vmatmul.mubr.f32.gmra.mxu0 %v716
      %v813 = vpop.f32.mrf.mxu0
      %v814 = vadd.f32 0.0, %v813
      %v815 = vpop.f32.mrf.mxu0
      %816 = vmatprep.mubr.f32.mxu0 0.0
      %817 = vmatmul.mubr.f32.gmra.mxu0 %v719
      %v818 = vpop.f32.mrf.mxu0
      %v819 = vadd.f32 0.0, %v818
      %v820 = vpop.f32.mrf.mxu0
      %821 = vmatprep.mubr.f32.mxu0 0.0
      %822 = vmatmul.mubr.f32.gmra.mxu0 %v722
      %v823 = vpop.f32.mrf.mxu0
      %v824 = vadd.f32 0.0, %v823
      %v825 = vpop.f32.mrf.mxu0
      %826 = vmatprep.mubr.f32.mxu0 0.0
      %827 = vmatmul.mubr.f32.gmra.mxu0 %v725
      %v828 = vpop.f32.mrf.mxu0
      %v829 = vadd.f32 0.0, %v828
      %v830 = vpop.f32.mrf.mxu0
      %831 = vmatprep.mubr.f32.mxu0 0.0
      %832 = vmatmul.mubr.f32.gmra.mxu0 %v728
      %v833 = vpop.f32.mrf.mxu0
      %v834 = vadd.f32 0.0, %v833
      %v835 = vpop.f32.mrf.mxu0
      %836 = vmatprep.mubr.f32.mxu0 0.0
      %837 = vmatmul.mubr.f32.gmra.mxu0 %v731
      %v838 = vpop.f32.mrf.mxu0
      %v839 = vadd.f32 0.0, %v838
      %v840 = vpop.f32.mrf.mxu0
      %841 = vdwg.mxu0
      %v843 = vsel %vm577, %v650, 0
      %v846 = vsel %vm577, %v651, 0
      %v849 = vsel %vm577, %v652, 0
      %v852 = vsel %vm577, %v653, 0
      %v855 = vsel %vm577, %v654, 0
      %v858 = vsel %vm577, %v655, 0
      %v861 = vsel %vm577, %v656, 0
      %v864 = vsel %vm577, %v657, 0
      %v867 = vsel %vm733, %v658, 0
      %869 = vmatprep.subr.mxu0 0.0
      %870 = vmatpush1.msra.mxu0 0.0
      %871 = vmatprep.subr.mxu0 0.0
      %872 = vmatpush1.msra.mxu0 0.0
      %873 = vmatprep.subr.mxu0 0.0
      %874 = vmatpush1.msra.mxu0 0.0
      %875 = vmatprep.subr.mxu0 0.0
      %876 = vmatpush1.msra.mxu0 0.0
      %877 = vmatprep.subr.mxu0 0.0
      %878 = vmatpush1.msra.mxu0 0.0
      %879 = vmatprep.subr.mxu0 0.0
      %880 = vmatpush1.msra.mxu0 0.0
      %881 = vmatprep.subr.mxu0 0.0
      %882 = vmatpush1.msra.mxu0 0.0
      %883 = vmatprep.subr.mxu0 0.0
      %884 = vmatpush1.msra.mxu0 0.0
      %885 = vmatprep.subr.mxu0 0.0
      %886 = vmatpush1.msra.mxu0 0.0
      %887 = vmatprep.subr.mxu0 0.0
      %888 = vmatpush1.msra.mxu0 0.0
      %889 = vmatprep.subr.mxu0 0.0
      %890 = vmatpush1.msra.mxu0 0.0
      %891 = vmatprep.subr.mxu0 0.0
      %892 = vmatpush1.msra.mxu0 0.0
      %893 = vmatprep.subr.mxu0 0.0
      %894 = vmatpush1.msra.mxu0 0.0
      %895 = vmatprep.subr.mxu0 0.0
      %896 = vmatpush1.msra.mxu0 0.0
      %897 = vmatprep.subr.mxu0 0.0
      %898 = vmatpush1.msra.mxu0 0.0
      %899 = vmatprep.subr.mxu0 0.0
      %900 = vmatpush1.msra.mxu0 %v867
      %901 = vmatprep.subr.mxu0 0.0
      %902 = vmatpush2.msra.mxu0 0.0
      %903 = vmatprep.subr.mxu0 0.0
      %904 = vmatpush2.msra.mxu0 0.0
      %905 = vmatprep.subr.mxu0 0.0
      %906 = vmatpush2.msra.mxu0 0.0
      %907 = vmatprep.subr.mxu0 0.0
      %908 = vmatpush2.msra.mxu0 0.0
      %909 = vmatprep.subr.mxu0 0.0
      %910 = vmatpush2.msra.mxu0 0.0
      %911 = vmatprep.subr.mxu0 0.0
      %912 = vmatpush2.msra.mxu0 0.0
      %913 = vmatprep.subr.mxu0 0.0
      %914 = vmatpush2.msra.mxu0 0.0
      %915 = vmatprep.subr.mxu0 0.0
      %916 = vmatpush2.msra.mxu0 0.0
      %917 = vmatprep.subr.mxu0 0.0
      %918 = vmatpush2.msra.mxu0 0.0
      %919 = vmatprep.subr.mxu0 0.0
      %920 = vmatpush2.msra.mxu0 0.0
      %921 = vmatprep.subr.mxu0 0.0
      %922 = vmatpush2.msra.mxu0 0.0
      %923 = vmatprep.subr.mxu0 0.0
      %924 = vmatpush2.msra.mxu0 0.0
      %925 = vmatprep.subr.mxu0 0.0
      %926 = vmatpush2.msra.mxu0 0.0
      %927 = vmatprep.subr.mxu0 0.0
      %928 = vmatpush2.msra.mxu0 0.0
      %929 = vmatprep.subr.mxu0 0.0
      %930 = vmatpush2.msra.mxu0 0.0
      %931 = vmatprep.subr.mxu0 0.0
      %932 = vmatpush2.msra.mxu0 0.0
      %933 = vmatprep.mubr.f32.mxu0 0.0
      %934 = vmatmul.mubr.f32.gmra.mxu0 %v843
      %v935 = vpop.f32.mrf.mxu0
      %v936 = vadd.f32 %v804, %v935
      %v937 = vpop.f32.mrf.mxu0
      %938 = vmatprep.mubr.f32.mxu0 0.0
      %939 = vmatmul.mubr.f32.gmra.mxu0 %v846
      %v940 = vpop.f32.mrf.mxu0
      %v941 = vadd.f32 %v809, %v940
      %v942 = vpop.f32.mrf.mxu0
      %943 = vmatprep.mubr.f32.mxu0 0.0
      %944 = vmatmul.mubr.f32.gmra.mxu0 %v849
      %v945 = vpop.f32.mrf.mxu0
      %v946 = vadd.f32 %v814, %v945
      %v947 = vpop.f32.mrf.mxu0
      %948 = vmatprep.mubr.f32.mxu0 0.0
      %949 = vmatmul.mubr.f32.gmra.mxu0 %v852
      %v950 = vpop.f32.mrf.mxu0
      %v951 = vadd.f32 %v819, %v950
      %v952 = vpop.f32.mrf.mxu0
      %953 = vmatprep.mubr.f32.mxu0 0.0
      %954 = vmatmul.mubr.f32.gmra.mxu0 %v855
      %v955 = vpop.f32.mrf.mxu0
      %v956 = vadd.f32 %v824, %v955
      %v957 = vpop.f32.mrf.mxu0
      %958 = vmatprep.mubr.f32.mxu0 0.0
      %959 = vmatmul.mubr.f32.gmra.mxu0 %v858
      %v960 = vpop.f32.mrf.mxu0
      %v961 = vadd.f32 %v829, %v960
      %v962 = vpop.f32.mrf.mxu0
      %963 = vmatprep.mubr.f32.mxu0 0.0
      %964 = vmatmul.mubr.f32.gmra.mxu0 %v861
      %v965 = vpop.f32.mrf.mxu0
      %v966 = vadd.f32 %v834, %v965
      %v967 = vpop.f32.mrf.mxu0
      %968 = vmatprep.mubr.f32.mxu0 0.0
      %969 = vmatmul.mubr.f32.gmra.mxu0 %v864
      %v970 = vpop.f32.mrf.mxu0
      %v971 = vadd.f32 %v839, %v970
      %v972 = vpop.f32.mrf.mxu0
      %973 = vdwg.mxu0
      %v974 = vld [vmem:[#allocation2 + $0x9] sm:$0xff]
      %v975 = vld [vmem:[#allocation2 + $0x11] sm:$0xff]
      %v976 = vld [vmem:[#allocation2 + $0x19] sm:$0xff]
      %v977 = vld [vmem:[#allocation2 + $0x21] sm:$0xff]
      %v978 = vld [vmem:[#allocation2 + $0x29] sm:$0xff]
      %v979 = vld [vmem:[#allocation2 + $0x31] sm:$0xff]
      %v980 = vld [vmem:[#allocation2 + $0x39] sm:$0xff]
      %v981 = vld [vmem:[#allocation2 + $0x41] sm:$0xff]
      %982 = vset.pattern.permute.xlu0 2
      %983 = vperm.xlu0 %982, %v610
      %v984 = vpop.permute.xlu0 %983
      %985 = vset.pattern.permute.xlu0 2
      %986 = vperm.xlu0 %985, %v611
      %v987 = vpop.permute.xlu0 %986
      %988 = vset.pattern.permute.xlu0 2
      %989 = vperm.xlu0 %988, %v612
      %v990 = vpop.permute.xlu0 %989
      %991 = vset.pattern.permute.xlu0 2
      %992 = vperm.xlu0 %991, %v613
      %v993 = vpop.permute.xlu0 %992
      %994 = vset.pattern.permute.xlu0 2
      %995 = vperm.xlu0 %994, %v614
      %v996 = vpop.permute.xlu0 %995
      %997 = vset.pattern.permute.xlu0 2
      %998 = vperm.xlu0 %997, %v615
      %v999 = vpop.permute.xlu0 %998
      %1000 = vset.pattern.permute.xlu0 2
      %1001 = vperm.xlu0 %1000, %v616
      %v1002 = vpop.permute.xlu0 %1001
      %1003 = vset.pattern.permute.xlu0 2
      %1004 = vperm.xlu0 %1003, %v617
      %v1005 = vpop.permute.xlu0 %1004
      %vm1006 = vcmp.eq.s32.totalorder %v984, 1
      %vm1007 = vcmp.eq.s32.totalorder %v987, 1
      %vm1008 = vcmp.eq.s32.totalorder %v990, 1
      %vm1009 = vcmp.eq.s32.totalorder %v993, 1
      %vm1010 = vcmp.eq.s32.totalorder %v996, 1
      %vm1011 = vcmp.eq.s32.totalorder %v999, 1
      %vm1012 = vcmp.eq.s32.totalorder %v1002, 1
      %vm1013 = vcmp.eq.s32.totalorder %v1005, 1
      %v1014 = vsel %vm1006, %v974, 0.0
      %v1015 = vsel %vm1007, %v975, 0.0
      %v1016 = vsel %vm1008, %v976, 0.0
      %v1017 = vsel %vm1009, %v977, 0.0
      %v1018 = vsel %vm1010, %v978, 0.0
      %v1019 = vsel %vm1011, %v979, 0.0
      %v1020 = vsel %vm1012, %v980, 0.0
      %v1021 = vsel %vm1013, %v981, 0.0
      %s1022 = scalar_lea.vmem %s5, 8
      %v1023 = vld [vmem:[%s1022] sm:$0xf]
      %v1025 = vsel %vm577, %v1014, 0
      %v1028 = vsel %vm577, %v1015, 0
      %v1031 = vsel %vm577, %v1016, 0
      %v1034 = vsel %vm577, %v1017, 0
      %v1037 = vsel %vm577, %v1018, 0
      %v1040 = vsel %vm577, %v1019, 0
      %v1043 = vsel %vm577, %v1020, 0
      %v1046 = vsel %vm577, %v1021, 0
      %v1049 = vsel %vm733, %v1023, 0
      %1051 = vmatprep.subr.mxu0 0.0
      %1052 = vmatpush1.msra.mxu0 0.0
      %1053 = vmatprep.subr.mxu0 0.0
      %1054 = vmatpush1.msra.mxu0 0.0
      %1055 = vmatprep.subr.mxu0 0.0
      %1056 = vmatpush1.msra.mxu0 0.0
      %1057 = vmatprep.subr.mxu0 0.0
      %1058 = vmatpush1.msra.mxu0 0.0
      %1059 = vmatprep.subr.mxu0 0.0
      %1060 = vmatpush1.msra.mxu0 0.0
      %1061 = vmatprep.subr.mxu0 0.0
      %1062 = vmatpush1.msra.mxu0 0.0
      %1063 = vmatprep.subr.mxu0 0.0
      %1064 = vmatpush1.msra.mxu0 0.0
      %1065 = vmatprep.subr.mxu0 0.0
      %1066 = vmatpush1.msra.mxu0 0.0
      %1067 = vmatprep.subr.mxu0 0.0
      %1068 = vmatpush1.msra.mxu0 0.0
      %1069 = vmatprep.subr.mxu0 0.0
      %1070 = vmatpush1.msra.mxu0 0.0
      %1071 = vmatprep.subr.mxu0 0.0
      %1072 = vmatpush1.msra.mxu0 0.0
      %1073 = vmatprep.subr.mxu0 0.0
      %1074 = vmatpush1.msra.mxu0 0.0
      %1075 = vmatprep.subr.mxu0 0.0
      %1076 = vmatpush1.msra.mxu0 0.0
      %1077 = vmatprep.subr.mxu0 0.0
      %1078 = vmatpush1.msra.mxu0 0.0
      %1079 = vmatprep.subr.mxu0 0.0
      %1080 = vmatpush1.msra.mxu0 0.0
      %1081 = vmatprep.subr.mxu0 0.0
      %1082 = vmatpush1.msra.mxu0 %v1049
      %1083 = vmatprep.subr.mxu0 0.0
      %1084 = vmatpush2.msra.mxu0 0.0
      %1085 = vmatprep.subr.mxu0 0.0
      %1086 = vmatpush2.msra.mxu0 0.0
      %1087 = vmatprep.subr.mxu0 0.0
      %1088 = vmatpush2.msra.mxu0 0.0
      %1089 = vmatprep.subr.mxu0 0.0
      %1090 = vmatpush2.msra.mxu0 0.0
      %1091 = vmatprep.subr.mxu0 0.0
      %1092 = vmatpush2.msra.mxu0 0.0
      %1093 = vmatprep.subr.mxu0 0.0
      %1094 = vmatpush2.msra.mxu0 0.0
      %1095 = vmatprep.subr.mxu0 0.0
      %1096 = vmatpush2.msra.mxu0 0.0
      %1097 = vmatprep.subr.mxu0 0.0
      %1098 = vmatpush2.msra.mxu0 0.0
      %1099 = vmatprep.subr.mxu0 0.0
      %1100 = vmatpush2.msra.mxu0 0.0
      %1101 = vmatprep.subr.mxu0 0.0
      %1102 = vmatpush2.msra.mxu0 0.0
      %1103 = vmatprep.subr.mxu0 0.0
      %1104 = vmatpush2.msra.mxu0 0.0
      %1105 = vmatprep.subr.mxu0 0.0
      %1106 = vmatpush2.msra.mxu0 0.0
      %1107 = vmatprep.subr.mxu0 0.0
      %1108 = vmatpush2.msra.mxu0 0.0
      %1109 = vmatprep.subr.mxu0 0.0
      %1110 = vmatpush2.msra.mxu0 0.0
      %1111 = vmatprep.subr.mxu0 0.0
      %1112 = vmatpush2.msra.mxu0 0.0
      %1113 = vmatprep.subr.mxu0 0.0
      %1114 = vmatpush2.msra.mxu0 0.0
      %1115 = vmatprep.mubr.f32.mxu0 0.0
      %1116 = vmatmul.mubr.f32.gmra.mxu0 %v1025
      %v1117 = vpop.f32.mrf.mxu0
      %v1118 = vadd.f32 0.0, %v1117
      %v1119 = vpop.f32.mrf.mxu0
      %1120 = vmatprep.mubr.f32.mxu0 0.0
      %1121 = vmatmul.mubr.f32.gmra.mxu0 %v1028
      %v1122 = vpop.f32.mrf.mxu0
      %v1123 = vadd.f32 0.0, %v1122
      %v1124 = vpop.f32.mrf.mxu0
      %1125 = vmatprep.mubr.f32.mxu0 0.0
      %1126 = vmatmul.mubr.f32.gmra.mxu0 %v1031
      %v1127 = vpop.f32.mrf.mxu0
      %v1128 = vadd.f32 0.0, %v1127
      %v1129 = vpop.f32.mrf.mxu0
      %1130 = vmatprep.mubr.f32.mxu0 0.0
      %1131 = vmatmul.mubr.f32.gmra.mxu0 %v1034
      %v1132 = vpop.f32.mrf.mxu0
      %v1133 = vadd.f32 0.0, %v1132
      %v1134 = vpop.f32.mrf.mxu0
      %1135 = vmatprep.mubr.f32.mxu0 0.0
      %1136 = vmatmul.mubr.f32.gmra.mxu0 %v1037
      %v1137 = vpop.f32.mrf.mxu0
      %v1138 = vadd.f32 0.0, %v1137
      %v1139 = vpop.f32.mrf.mxu0
      %1140 = vmatprep.mubr.f32.mxu0 0.0
      %1141 = vmatmul.mubr.f32.gmra.mxu0 %v1040
      %v1142 = vpop.f32.mrf.mxu0
      %v1143 = vadd.f32 0.0, %v1142
      %v1144 = vpop.f32.mrf.mxu0
      %1145 = vmatprep.mubr.f32.mxu0 0.0
      %1146 = vmatmul.mubr.f32.gmra.mxu0 %v1043
      %v1147 = vpop.f32.mrf.mxu0
      %v1148 = vadd.f32 0.0, %v1147
      %v1149 = vpop.f32.mrf.mxu0
      %1150 = vmatprep.mubr.f32.mxu0 0.0
      %1151 = vmatmul.mubr.f32.gmra.mxu0 %v1046
      %v1152 = vpop.f32.mrf.mxu0
      %v1153 = vadd.f32 0.0, %v1152
      %v1154 = vpop.f32.mrf.mxu0
      %1155 = vdwg.mxu0
      %v1156 = vadd.f32 %v936, %v1118
      %v1157 = vadd.f32 %v941, %v1123
      %v1158 = vadd.f32 %v946, %v1128
      %v1159 = vadd.f32 %v951, %v1133
      %v1160 = vadd.f32 %v956, %v1138
      %v1161 = vadd.f32 %v961, %v1143
      %v1162 = vadd.f32 %v966, %v1148
      %v1163 = vadd.f32 %v971, %v1153
      %v1164 = vld [vmem:[#allocation2 + $0xf] sm:$0xff]
      %v1165 = vld [vmem:[#allocation2 + $0x17] sm:$0xff]
      %v1166 = vld [vmem:[#allocation2 + $0x1f] sm:$0xff]
      %v1167 = vld [vmem:[#allocation2 + $0x27] sm:$0xff]
      %v1168 = vld [vmem:[#allocation2 + $0x2f] sm:$0xff]
      %v1169 = vld [vmem:[#allocation2 + $0x37] sm:$0xff]
      %v1170 = vld [vmem:[#allocation2 + $0x3f] sm:$0xff]
      %v1171 = vld [vmem:[#allocation2 + $0x47] sm:$0xff]
      %1172 = vset.pattern.permute.xlu0 3
      %1173 = vperm.xlu0 %1172, %v610
      %v1174 = vpop.permute.xlu0 %1173
      %1175 = vset.pattern.permute.xlu0 3
      %1176 = vperm.xlu0 %1175, %v611
      %v1177 = vpop.permute.xlu0 %1176
      %1178 = vset.pattern.permute.xlu0 3
      %1179 = vperm.xlu0 %1178, %v612
      %v1180 = vpop.permute.xlu0 %1179
      %1181 = vset.pattern.permute.xlu0 3
      %1182 = vperm.xlu0 %1181, %v613
      %v1183 = vpop.permute.xlu0 %1182
      %1184 = vset.pattern.permute.xlu0 3
      %1185 = vperm.xlu0 %1184, %v614
      %v1186 = vpop.permute.xlu0 %1185
      %1187 = vset.pattern.permute.xlu0 3
      %1188 = vperm.xlu0 %1187, %v615
      %v1189 = vpop.permute.xlu0 %1188
      %1190 = vset.pattern.permute.xlu0 3
      %1191 = vperm.xlu0 %1190, %v616
      %v1192 = vpop.permute.xlu0 %1191
      %1193 = vset.pattern.permute.xlu0 3
      %1194 = vperm.xlu0 %1193, %v617
      %v1195 = vpop.permute.xlu0 %1194
      %vm1196 = vcmp.eq.s32.totalorder %v1174, 1
      %vm1197 = vcmp.eq.s32.totalorder %v1177, 1
      %vm1198 = vcmp.eq.s32.totalorder %v1180, 1
      %vm1199 = vcmp.eq.s32.totalorder %v1183, 1
      %vm1200 = vcmp.eq.s32.totalorder %v1186, 1
      %vm1201 = vcmp.eq.s32.totalorder %v1189, 1
      %vm1202 = vcmp.eq.s32.totalorder %v1192, 1
      %vm1203 = vcmp.eq.s32.totalorder %v1195, 1
      %v1204 = vsel %vm1196, %v1164, 0.0
      %v1205 = vsel %vm1197, %v1165, 0.0
      %v1206 = vsel %vm1198, %v1166, 0.0
      %v1207 = vsel %vm1199, %v1167, 0.0
      %v1208 = vsel %vm1200, %v1168, 0.0
      %v1209 = vsel %vm1201, %v1169, 0.0
      %v1210 = vsel %vm1202, %v1170, 0.0
      %v1211 = vsel %vm1203, %v1171, 0.0
      %s1212 = scalar_lea.vmem %s5, 12
      %v1213 = vld [vmem:[%s1212] sm:$0xf]
      %v1215 = vsel %vm577, %v1204, 0
      %v1218 = vsel %vm577, %v1205, 0
      %v1221 = vsel %vm577, %v1206, 0
      %v1224 = vsel %vm577, %v1207, 0
      %v1227 = vsel %vm577, %v1208, 0
      %v1230 = vsel %vm577, %v1209, 0
      %v1233 = vsel %vm577, %v1210, 0
      %v1236 = vsel %vm577, %v1211, 0
      %v1239 = vsel %vm733, %v1213, 0
      %1241 = vmatprep.subr.mxu0 0.0
      %1242 = vmatpush1.msra.mxu0 0.0
      %1243 = vmatprep.subr.mxu0 0.0
      %1244 = vmatpush1.msra.mxu0 0.0
      %1245 = vmatprep.subr.mxu0 0.0
      %1246 = vmatpush1.msra.mxu0 0.0
      %1247 = vmatprep.subr.mxu0 0.0
      %1248 = vmatpush1.msra.mxu0 0.0
      %1249 = vmatprep.subr.mxu0 0.0
      %1250 = vmatpush1.msra.mxu0 0.0
      %1251 = vmatprep.subr.mxu0 0.0
      %1252 = vmatpush1.msra.mxu0 0.0
      %1253 = vmatprep.subr.mxu0 0.0
      %1254 = vmatpush1.msra.mxu0 0.0
      %1255 = vmatprep.subr.mxu0 0.0
      %1256 = vmatpush1.msra.mxu0 0.0
      %1257 = vmatprep.subr.mxu0 0.0
      %1258 = vmatpush1.msra.mxu0 0.0
      %1259 = vmatprep.subr.mxu0 0.0
      %1260 = vmatpush1.msra.mxu0 0.0
      %1261 = vmatprep.subr.mxu0 0.0
      %1262 = vmatpush1.msra.mxu0 0.0
      %1263 = vmatprep.subr.mxu0 0.0
      %1264 = vmatpush1.msra.mxu0 0.0
      %1265 = vmatprep.subr.mxu0 0.0
      %1266 = vmatpush1.msra.mxu0 0.0
      %1267 = vmatprep.subr.mxu0 0.0
      %1268 = vmatpush1.msra.mxu0 0.0
      %1269 = vmatprep.subr.mxu0 0.0
      %1270 = vmatpush1.msra.mxu0 0.0
      %1271 = vmatprep.subr.mxu0 0.0
      %1272 = vmatpush1.msra.mxu0 %v1239
      %1273 = vmatprep.subr.mxu0 0.0
      %1274 = vmatpush2.msra.mxu0 0.0
      %1275 = vmatprep.subr.mxu0 0.0
      %1276 = vmatpush2.msra.mxu0 0.0
      %1277 = vmatprep.subr.mxu0 0.0
      %1278 = vmatpush2.msra.mxu0 0.0
      %1279 = vmatprep.subr.mxu0 0.0
      %1280 = vmatpush2.msra.mxu0 0.0
      %1281 = vmatprep.subr.mxu0 0.0
      %1282 = vmatpush2.msra.mxu0 0.0
      %1283 = vmatprep.subr.mxu0 0.0
      %1284 = vmatpush2.msra.mxu0 0.0
      %1285 = vmatprep.subr.mxu0 0.0
      %1286 = vmatpush2.msra.mxu0 0.0
      %1287 = vmatprep.subr.mxu0 0.0
      %1288 = vmatpush2.msra.mxu0 0.0
      %1289 = vmatprep.subr.mxu0 0.0
      %1290 = vmatpush2.msra.mxu0 0.0
      %1291 = vmatprep.subr.mxu0 0.0
      %1292 = vmatpush2.msra.mxu0 0.0
      %1293 = vmatprep.subr.mxu0 0.0
      %1294 = vmatpush2.msra.mxu0 0.0
      %1295 = vmatprep.subr.mxu0 0.0
      %1296 = vmatpush2.msra.mxu0 0.0
      %1297 = vmatprep.subr.mxu0 0.0
      %1298 = vmatpush2.msra.mxu0 0.0
      %1299 = vmatprep.subr.mxu0 0.0
      %1300 = vmatpush2.msra.mxu0 0.0
      %1301 = vmatprep.subr.mxu0 0.0
      %1302 = vmatpush2.msra.mxu0 0.0
      %1303 = vmatprep.subr.mxu0 0.0
      %1304 = vmatpush2.msra.mxu0 0.0
      %1305 = vmatprep.mubr.f32.mxu0 0.0
      %1306 = vmatmul.mubr.f32.gmra.mxu0 %v1215
      %v1307 = vpop.f32.mrf.mxu0
      %v1308 = vadd.f32 0.0, %v1307
      %v1309 = vpop.f32.mrf.mxu0
      %1310 = vmatprep.mubr.f32.mxu0 0.0
      %1311 = vmatmul.mubr.f32.gmra.mxu0 %v1218
      %v1312 = vpop.f32.mrf.mxu0
      %v1313 = vadd.f32 0.0, %v1312
      %v1314 = vpop.f32.mrf.mxu0
      %1315 = vmatprep.mubr.f32.mxu0 0.0
      %1316 = vmatmul.mubr.f32.gmra.mxu0 %v1221
      %v1317 = vpop.f32.mrf.mxu0
      %v1318 = vadd.f32 0.0, %v1317
      %v1319 = vpop.f32.mrf.mxu0
      %1320 = vmatprep.mubr.f32.mxu0 0.0
      %1321 = vmatmul.mubr.f32.gmra.mxu0 %v1224
      %v1322 = vpop.f32.mrf.mxu0
      %v1323 = vadd.f32 0.0, %v1322
      %v1324 = vpop.f32.mrf.mxu0
      %1325 = vmatprep.mubr.f32.mxu0 0.0
      %1326 = vmatmul.mubr.f32.gmra.mxu0 %v1227
      %v1327 = vpop.f32.mrf.mxu0
      %v1328 = vadd.f32 0.0, %v1327
      %v1329 = vpop.f32.mrf.mxu0
      %1330 = vmatprep.mubr.f32.mxu0 0.0
      %1331 = vmatmul.mubr.f32.gmra.mxu0 %v1230
      %v1332 = vpop.f32.mrf.mxu0
      %v1333 = vadd.f32 0.0, %v1332
      %v1334 = vpop.f32.mrf.mxu0
      %1335 = vmatprep.mubr.f32.mxu0 0.0
      %1336 = vmatmul.mubr.f32.gmra.mxu0 %v1233
      %v1337 = vpop.f32.mrf.mxu0
      %v1338 = vadd.f32 0.0, %v1337
      %v1339 = vpop.f32.mrf.mxu0
      %1340 = vmatprep.mubr.f32.mxu0 0.0
      %1341 = vmatmul.mubr.f32.gmra.mxu0 %v1236
      %v1342 = vpop.f32.mrf.mxu0
      %v1343 = vadd.f32 0.0, %v1342
      %v1344 = vpop.f32.mrf.mxu0
      %1345 = vdwg.mxu0
      %v1346 = vadd.f32 %v1156, %v1308
      %v1347 = vadd.f32 %v1157, %v1313
      %v1348 = vadd.f32 %v1158, %v1318
      %v1349 = vadd.f32 %v1159, %v1323
      %v1350 = vadd.f32 %v1160, %v1328
      %v1351 = vadd.f32 %v1161, %v1333
      %v1352 = vadd.f32 %v1162, %v1338
      %v1353 = vadd.f32 %v1163, %v1343
      %v1354 = vld [vmem:[#allocation2 + $0x10] sm:$0xff]
      %v1355 = vld [vmem:[#allocation2 + $0x18] sm:$0xff]
      %v1356 = vld [vmem:[#allocation2 + $0x20] sm:$0xff]
      %v1357 = vld [vmem:[#allocation2 + $0x28] sm:$0xff]
      %v1358 = vld [vmem:[#allocation2 + $0x30] sm:$0xff]
      %v1359 = vld [vmem:[#allocation2 + $0x38] sm:$0xff]
      %v1360 = vld [vmem:[#allocation2 + $0x40] sm:$0xff]
      %v1361 = vld [vmem:[#allocation2 + $0x48] sm:$0xff]
      %1362 = vset.pattern.permute.xlu0 4
      %1363 = vperm.xlu0 %1362, %v610
      %v1364 = vpop.permute.xlu0 %1363
      %1365 = vset.pattern.permute.xlu0 4
      %1366 = vperm.xlu0 %1365, %v611
      %v1367 = vpop.permute.xlu0 %1366
      %1368 = vset.pattern.permute.xlu0 4
      %1369 = vperm.xlu0 %1368, %v612
      %v1370 = vpop.permute.xlu0 %1369
      %1371 = vset.pattern.permute.xlu0 4
      %1372 = vperm.xlu0 %1371, %v613
      %v1373 = vpop.permute.xlu0 %1372
      %1374 = vset.pattern.permute.xlu0 4
      %1375 = vperm.xlu0 %1374, %v614
      %v1376 = vpop.permute.xlu0 %1375
      %1377 = vset.pattern.permute.xlu0 4
      %1378 = vperm.xlu0 %1377, %v615
      %v1379 = vpop.permute.xlu0 %1378
      %1380 = vset.pattern.permute.xlu0 4
      %1381 = vperm.xlu0 %1380, %v616
      %v1382 = vpop.permute.xlu0 %1381
      %1383 = vset.pattern.permute.xlu0 4
      %1384 = vperm.xlu0 %1383, %v617
      %v1385 = vpop.permute.xlu0 %1384
      %vm1386 = vcmp.eq.s32.totalorder %v1364, 1
      %vm1387 = vcmp.eq.s32.totalorder %v1367, 1
      %vm1388 = vcmp.eq.s32.totalorder %v1370, 1
      %vm1389 = vcmp.eq.s32.totalorder %v1373, 1
      %vm1390 = vcmp.eq.s32.totalorder %v1376, 1
      %vm1391 = vcmp.eq.s32.totalorder %v1379, 1
      %vm1392 = vcmp.eq.s32.totalorder %v1382, 1
      %vm1393 = vcmp.eq.s32.totalorder %v1385, 1
      %v1394 = vsel %vm1386, %v1354, 0.0
      %v1395 = vsel %vm1387, %v1355, 0.0
      %v1396 = vsel %vm1388, %v1356, 0.0
      %v1397 = vsel %vm1389, %v1357, 0.0
      %v1398 = vsel %vm1390, %v1358, 0.0
      %v1399 = vsel %vm1391, %v1359, 0.0
      %v1400 = vsel %vm1392, %v1360, 0.0
      %v1401 = vsel %vm1393, %v1361, 0.0
      %s1402 = scalar_lea.vmem %s5, 16
      %v1403 = vld [vmem:[%s1402] sm:$0xf]
      %v1405 = vsel %vm577, %v1394, 0
      %v1408 = vsel %vm577, %v1395, 0
      %v1411 = vsel %vm577, %v1396, 0
      %v1414 = vsel %vm577, %v1397, 0
      %v1417 = vsel %vm577, %v1398, 0
      %v1420 = vsel %vm577, %v1399, 0
      %v1423 = vsel %vm577, %v1400, 0
      %v1426 = vsel %vm577, %v1401, 0
      %v1429 = vsel %vm733, %v1403, 0
      %1431 = vmatprep.subr.mxu0 0.0
      %1432 = vmatpush1.msra.mxu0 0.0
      %1433 = vmatprep.subr.mxu0 0.0
      %1434 = vmatpush1.msra.mxu0 0.0
      %1435 = vmatprep.subr.mxu0 0.0
      %1436 = vmatpush1.msra.mxu0 0.0
      %1437 = vmatprep.subr.mxu0 0.0
      %1438 = vmatpush1.msra.mxu0 0.0
      %1439 = vmatprep.subr.mxu0 0.0
      %1440 = vmatpush1.msra.mxu0 0.0
      %1441 = vmatprep.subr.mxu0 0.0
      %1442 = vmatpush1.msra.mxu0 0.0
      %1443 = vmatprep.subr.mxu0 0.0
      %1444 = vmatpush1.msra.mxu0 0.0
      %1445 = vmatprep.subr.mxu0 0.0
      %1446 = vmatpush1.msra.mxu0 0.0
      %1447 = vmatprep.subr.mxu0 0.0
      %1448 = vmatpush1.msra.mxu0 0.0
      %1449 = vmatprep.subr.mxu0 0.0
      %1450 = vmatpush1.msra.mxu0 0.0
      %1451 = vmatprep.subr.mxu0 0.0
      %1452 = vmatpush1.msra.mxu0 0.0
      %1453 = vmatprep.subr.mxu0 0.0
      %1454 = vmatpush1.msra.mxu0 0.0
      %1455 = vmatprep.subr.mxu0 0.0
      %1456 = vmatpush1.msra.mxu0 0.0
      %1457 = vmatprep.subr.mxu0 0.0
      %1458 = vmatpush1.msra.mxu0 0.0
      %1459 = vmatprep.subr.mxu0 0.0
      %1460 = vmatpush1.msra.mxu0 0.0
      %1461 = vmatprep.subr.mxu0 0.0
      %1462 = vmatpush1.msra.mxu0 %v1429
      %1463 = vmatprep.subr.mxu0 0.0
      %1464 = vmatpush2.msra.mxu0 0.0
      %1465 = vmatprep.subr.mxu0 0.0
      %1466 = vmatpush2.msra.mxu0 0.0
      %1467 = vmatprep.subr.mxu0 0.0
      %1468 = vmatpush2.msra.mxu0 0.0
      %1469 = vmatprep.subr.mxu0 0.0
      %1470 = vmatpush2.msra.mxu0 0.0
      %1471 = vmatprep.subr.mxu0 0.0
      %1472 = vmatpush2.msra.mxu0 0.0
      %1473 = vmatprep.subr.mxu0 0.0
      %1474 = vmatpush2.msra.mxu0 0.0
      %1475 = vmatprep.subr.mxu0 0.0
      %1476 = vmatpush2.msra.mxu0 0.0
      %1477 = vmatprep.subr.mxu0 0.0
      %1478 = vmatpush2.msra.mxu0 0.0
      %1479 = vmatprep.subr.mxu0 0.0
      %1480 = vmatpush2.msra.mxu0 0.0
      %1481 = vmatprep.subr.mxu0 0.0
      %1482 = vmatpush2.msra.mxu0 0.0
      %1483 = vmatprep.subr.mxu0 0.0
      %1484 = vmatpush2.msra.mxu0 0.0
      %1485 = vmatprep.subr.mxu0 0.0
      %1486 = vmatpush2.msra.mxu0 0.0
      %1487 = vmatprep.subr.mxu0 0.0
      %1488 = vmatpush2.msra.mxu0 0.0
      %1489 = vmatprep.subr.mxu0 0.0
      %1490 = vmatpush2.msra.mxu0 0.0
      %1491 = vmatprep.subr.mxu0 0.0
      %1492 = vmatpush2.msra.mxu0 0.0
      %1493 = vmatprep.subr.mxu0 0.0
      %1494 = vmatpush2.msra.mxu0 0.0
      %1495 = vmatprep.mubr.f32.mxu0 0.0
      %1496 = vmatmul.mubr.f32.gmra.mxu0 %v1405
      %v1497 = vpop.f32.mrf.mxu0
      %v1498 = vadd.f32 0.0, %v1497
      %v1499 = vpop.f32.mrf.mxu0
      %1500 = vmatprep.mubr.f32.mxu0 0.0
      %1501 = vmatmul.mubr.f32.gmra.mxu0 %v1408
      %v1502 = vpop.f32.mrf.mxu0
      %v1503 = vadd.f32 0.0, %v1502
      %v1504 = vpop.f32.mrf.mxu0
      %1505 = vmatprep.mubr.f32.mxu0 0.0
      %1506 = vmatmul.mubr.f32.gmra.mxu0 %v1411
      %v1507 = vpop.f32.mrf.mxu0
      %v1508 = vadd.f32 0.0, %v1507
      %v1509 = vpop.f32.mrf.mxu0
      %1510 = vmatprep.mubr.f32.mxu0 0.0
      %1511 = vmatmul.mubr.f32.gmra.mxu0 %v1414
      %v1512 = vpop.f32.mrf.mxu0
      %v1513 = vadd.f32 0.0, %v1512
      %v1514 = vpop.f32.mrf.mxu0
      %1515 = vmatprep.mubr.f32.mxu0 0.0
      %1516 = vmatmul.mubr.f32.gmra.mxu0 %v1417
      %v1517 = vpop.f32.mrf.mxu0
      %v1518 = vadd.f32 0.0, %v1517
      %v1519 = vpop.f32.mrf.mxu0
      %1520 = vmatprep.mubr.f32.mxu0 0.0
      %1521 = vmatmul.mubr.f32.gmra.mxu0 %v1420
      %v1522 = vpop.f32.mrf.mxu0
      %v1523 = vadd.f32 0.0, %v1522
      %v1524 = vpop.f32.mrf.mxu0
      %1525 = vmatprep.mubr.f32.mxu0 0.0
      %1526 = vmatmul.mubr.f32.gmra.mxu0 %v1423
      %v1527 = vpop.f32.mrf.mxu0
      %v1528 = vadd.f32 0.0, %v1527
      %v1529 = vpop.f32.mrf.mxu0
      %1530 = vmatprep.mubr.f32.mxu0 0.0
      %1531 = vmatmul.mubr.f32.gmra.mxu0 %v1426
      %v1532 = vpop.f32.mrf.mxu0
      %v1533 = vadd.f32 0.0, %v1532
      %v1534 = vpop.f32.mrf.mxu0
      %1535 = vdwg.mxu0
      %v1536 = vadd.f32 %v1346, %v1498
      %v1537 = vadd.f32 %v1347, %v1503
      %v1538 = vadd.f32 %v1348, %v1508
      %v1539 = vadd.f32 %v1349, %v1513
      %v1540 = vadd.f32 %v1350, %v1518
      %v1541 = vadd.f32 %v1351, %v1523
      %v1542 = vadd.f32 %v1352, %v1528
      %v1543 = vadd.f32 %v1353, %v1533
      %v1544 = vld [vmem:[#allocation2 + $0x11] sm:$0xff]
      %v1545 = vld [vmem:[#allocation2 + $0x19] sm:$0xff]
      %v1546 = vld [vmem:[#allocation2 + $0x21] sm:$0xff]
      %v1547 = vld [vmem:[#allocation2 + $0x29] sm:$0xff]
      %v1548 = vld [vmem:[#allocation2 + $0x31] sm:$0xff]
      %v1549 = vld [vmem:[#allocation2 + $0x39] sm:$0xff]
      %v1550 = vld [vmem:[#allocation2 + $0x41] sm:$0xff]
      %v1551 = vld [vmem:[#allocation2 + $0x49] sm:$0xff]
      %1552 = vset.pattern.permute.xlu0 5
      %1553 = vperm.xlu0 %1552, %v610
      %v1554 = vpop.permute.xlu0 %1553
      %1555 = vset.pattern.permute.xlu0 5
      %1556 = vperm.xlu0 %1555, %v611
      %v1557 = vpop.permute.xlu0 %1556
      %1558 = vset.pattern.permute.xlu0 5
      %1559 = vperm.xlu0 %1558, %v612
      %v1560 = vpop.permute.xlu0 %1559
      %1561 = vset.pattern.permute.xlu0 5
      %1562 = vperm.xlu0 %1561, %v613
      %v1563 = vpop.permute.xlu0 %1562
      %1564 = vset.pattern.permute.xlu0 5
      %1565 = vperm.xlu0 %1564, %v614
      %v1566 = vpop.permute.xlu0 %1565
      %1567 = vset.pattern.permute.xlu0 5
      %1568 = vperm.xlu0 %1567, %v615
      %v1569 = vpop.permute.xlu0 %1568
      %1570 = vset.pattern.permute.xlu0 5
      %1571 = vperm.xlu0 %1570, %v616
      %v1572 = vpop.permute.xlu0 %1571
      %1573 = vset.pattern.permute.xlu0 5
      %1574 = vperm.xlu0 %1573, %v617
      %v1575 = vpop.permute.xlu0 %1574
      %vm1576 = vcmp.eq.s32.totalorder %v1554, 1
      %vm1577 = vcmp.eq.s32.totalorder %v1557, 1
      %vm1578 = vcmp.eq.s32.totalorder %v1560, 1
      %vm1579 = vcmp.eq.s32.totalorder %v1563, 1
      %vm1580 = vcmp.eq.s32.totalorder %v1566, 1
      %vm1581 = vcmp.eq.s32.totalorder %v1569, 1
      %vm1582 = vcmp.eq.s32.totalorder %v1572, 1
      %vm1583 = vcmp.eq.s32.totalorder %v1575, 1
      %v1584 = vsel %vm1576, %v1544, 0.0
      %v1585 = vsel %vm1577, %v1545, 0.0
      %v1586 = vsel %vm1578, %v1546, 0.0
      %v1587 = vsel %vm1579, %v1547, 0.0
      %v1588 = vsel %vm1580, %v1548, 0.0
      %v1589 = vsel %vm1581, %v1549, 0.0
      %v1590 = vsel %vm1582, %v1550, 0.0
      %v1591 = vsel %vm1583, %v1551, 0.0
      %s1592 = scalar_lea.vmem %s5, 20
      %v1593 = vld [vmem:[%s1592] sm:$0xf]
      %v1595 = vsel %vm577, %v1584, 0
      %v1598 = vsel %vm577, %v1585, 0
      %v1601 = vsel %vm577, %v1586, 0
      %v1604 = vsel %vm577, %v1587, 0
      %v1607 = vsel %vm577, %v1588, 0
      %v1610 = vsel %vm577, %v1589, 0
      %v1613 = vsel %vm577, %v1590, 0
      %v1616 = vsel %vm577, %v1591, 0
      %v1619 = vsel %vm733, %v1593, 0
      %1621 = vmatprep.subr.mxu0 0.0
      %1622 = vmatpush1.msra.mxu0 0.0
      %1623 = vmatprep.subr.mxu0 0.0
      %1624 = vmatpush1.msra.mxu0 0.0
      %1625 = vmatprep.subr.mxu0 0.0
      %1626 = vmatpush1.msra.mxu0 0.0
      %1627 = vmatprep.subr.mxu0 0.0
      %1628 = vmatpush1.msra.mxu0 0.0
      %1629 = vmatprep.subr.mxu0 0.0
      %1630 = vmatpush1.msra.mxu0 0.0
      %1631 = vmatprep.subr.mxu0 0.0
      %1632 = vmatpush1.msra.mxu0 0.0
      %1633 = vmatprep.subr.mxu0 0.0
      %1634 = vmatpush1.msra.mxu0 0.0
      %1635 = vmatprep.subr.mxu0 0.0
      %1636 = vmatpush1.msra.mxu0 0.0
      %1637 = vmatprep.subr.mxu0 0.0
      %1638 = vmatpush1.msra.mxu0 0.0
      %1639 = vmatprep.subr.mxu0 0.0
      %1640 = vmatpush1.msra.mxu0 0.0
      %1641 = vmatprep.subr.mxu0 0.0
      %1642 = vmatpush1.msra.mxu0 0.0
      %1643 = vmatprep.subr.mxu0 0.0
      %1644 = vmatpush1.msra.mxu0 0.0
      %1645 = vmatprep.subr.mxu0 0.0
      %1646 = vmatpush1.msra.mxu0 0.0
      %1647 = vmatprep.subr.mxu0 0.0
      %1648 = vmatpush1.msra.mxu0 0.0
      %1649 = vmatprep.subr.mxu0 0.0
      %1650 = vmatpush1.msra.mxu0 0.0
      %1651 = vmatprep.subr.mxu0 0.0
      %1652 = vmatpush1.msra.mxu0 %v1619
      %1653 = vmatprep.subr.mxu0 0.0
      %1654 = vmatpush2.msra.mxu0 0.0
      %1655 = vmatprep.subr.mxu0 0.0
      %1656 = vmatpush2.msra.mxu0 0.0
      %1657 = vmatprep.subr.mxu0 0.0
      %1658 = vmatpush2.msra.mxu0 0.0
      %1659 = vmatprep.subr.mxu0 0.0
      %1660 = vmatpush2.msra.mxu0 0.0
      %1661 = vmatprep.subr.mxu0 0.0
      %1662 = vmatpush2.msra.mxu0 0.0
      %1663 = vmatprep.subr.mxu0 0.0
      %1664 = vmatpush2.msra.mxu0 0.0
      %1665 = vmatprep.subr.mxu0 0.0
      %1666 = vmatpush2.msra.mxu0 0.0
      %1667 = vmatprep.subr.mxu0 0.0
      %1668 = vmatpush2.msra.mxu0 0.0
      %1669 = vmatprep.subr.mxu0 0.0
      %1670 = vmatpush2.msra.mxu0 0.0
      %1671 = vmatprep.subr.mxu0 0.0
      %1672 = vmatpush2.msra.mxu0 0.0
      %1673 = vmatprep.subr.mxu0 0.0
      %1674 = vmatpush2.msra.mxu0 0.0
      %1675 = vmatprep.subr.mxu0 0.0
      %1676 = vmatpush2.msra.mxu0 0.0
      %1677 = vmatprep.subr.mxu0 0.0
      %1678 = vmatpush2.msra.mxu0 0.0
      %1679 = vmatprep.subr.mxu0 0.0
      %1680 = vmatpush2.msra.mxu0 0.0
      %1681 = vmatprep.subr.mxu0 0.0
      %1682 = vmatpush2.msra.mxu0 0.0
      %1683 = vmatprep.subr.mxu0 0.0
      %1684 = vmatpush2.msra.mxu0 0.0
      %1685 = vmatprep.mubr.f32.mxu0 0.0
      %1686 = vmatmul.mubr.f32.gmra.mxu0 %v1595
      %v1687 = vpop.f32.mrf.mxu0
      %v1688 = vadd.f32 0.0, %v1687
      %v1689 = vpop.f32.mrf.mxu0
      %1690 = vmatprep.mubr.f32.mxu0 0.0
      %1691 = vmatmul.mubr.f32.gmra.mxu0 %v1598
      %v1692 = vpop.f32.mrf.mxu0
      %v1693 = vadd.f32 0.0, %v1692
      %v1694 = vpop.f32.mrf.mxu0
      %1695 = vmatprep.mubr.f32.mxu0 0.0
      %1696 = vmatmul.mubr.f32.gmra.mxu0 %v1601
      %v1697 = vpop.f32.mrf.mxu0
      %v1698 = vadd.f32 0.0, %v1697
      %v1699 = vpop.f32.mrf.mxu0
      %1700 = vmatprep.mubr.f32.mxu0 0.0
      %1701 = vmatmul.mubr.f32.gmra.mxu0 %v1604
      %v1702 = vpop.f32.mrf.mxu0
      %v1703 = vadd.f32 0.0, %v1702
      %v1704 = vpop.f32.mrf.mxu0
      %1705 = vmatprep.mubr.f32.mxu0 0.0
      %1706 = vmatmul.mubr.f32.gmra.mxu0 %v1607
      %v1707 = vpop.f32.mrf.mxu0
      %v1708 = vadd.f32 0.0, %v1707
      %v1709 = vpop.f32.mrf.mxu0
      %1710 = vmatprep.mubr.f32.mxu0 0.0
      %1711 = vmatmul.mubr.f32.gmra.mxu0 %v1610
      %v1712 = vpop.f32.mrf.mxu0
      %v1713 = vadd.f32 0.0, %v1712
      %v1714 = vpop.f32.mrf.mxu0
      %1715 = vmatprep.mubr.f32.mxu0 0.0
      %1716 = vmatmul.mubr.f32.gmra.mxu0 %v1613
      %v1717 = vpop.f32.mrf.mxu0
      %v1718 = vadd.f32 0.0, %v1717
      %v1719 = vpop.f32.mrf.mxu0
      %1720 = vmatprep.mubr.f32.mxu0 0.0
      %1721 = vmatmul.mubr.f32.gmra.mxu0 %v1616
      %v1722 = vpop.f32.mrf.mxu0
      %v1723 = vadd.f32 0.0, %v1722
      %v1724 = vpop.f32.mrf.mxu0
      %1725 = vdwg.mxu0
      %v1726 = vadd.f32 %v1536, %v1688
      %v1727 = vadd.f32 %v1537, %v1693
      %v1728 = vadd.f32 %v1538, %v1698
      %v1729 = vadd.f32 %v1539, %v1703
      %v1730 = vadd.f32 %v1540, %v1708
      %v1731 = vadd.f32 %v1541, %v1713
      %v1732 = vadd.f32 %v1542, %v1718
      %v1733 = vadd.f32 %v1543, %v1723
      %v1734 = vld [vmem:[#allocation2 + $0x17] sm:$0xff]
      %v1735 = vld [vmem:[#allocation2 + $0x1f] sm:$0xff]
      %v1736 = vld [vmem:[#allocation2 + $0x27] sm:$0xff]
      %v1737 = vld [vmem:[#allocation2 + $0x2f] sm:$0xff]
      %v1738 = vld [vmem:[#allocation2 + $0x37] sm:$0xff]
      %v1739 = vld [vmem:[#allocation2 + $0x3f] sm:$0xff]
      %v1740 = vld [vmem:[#allocation2 + $0x47] sm:$0xff]
      %v1741 = vld [vmem:[#allocation2 + $0x4f] sm:$0xff]
      %1742 = vset.pattern.permute.xlu0 6
      %1743 = vperm.xlu0 %1742, %v610
      %v1744 = vpop.permute.xlu0 %1743
      %1745 = vset.pattern.permute.xlu0 6
      %1746 = vperm.xlu0 %1745, %v611
      %v1747 = vpop.permute.xlu0 %1746
      %1748 = vset.pattern.permute.xlu0 6
      %1749 = vperm.xlu0 %1748, %v612
      %v1750 = vpop.permute.xlu0 %1749
      %1751 = vset.pattern.permute.xlu0 6
      %1752 = vperm.xlu0 %1751, %v613
      %v1753 = vpop.permute.xlu0 %1752
      %1754 = vset.pattern.permute.xlu0 6
      %1755 = vperm.xlu0 %1754, %v614
      %v1756 = vpop.permute.xlu0 %1755
      %1757 = vset.pattern.permute.xlu0 6
      %1758 = vperm.xlu0 %1757, %v615
      %v1759 = vpop.permute.xlu0 %1758
      %1760 = vset.pattern.permute.xlu0 6
      %1761 = vperm.xlu0 %1760, %v616
      %v1762 = vpop.permute.xlu0 %1761
      %1763 = vset.pattern.permute.xlu0 6
      %1764 = vperm.xlu0 %1763, %v617
      %v1765 = vpop.permute.xlu0 %1764
      %vm1766 = vcmp.eq.s32.totalorder %v1744, 1
      %vm1767 = vcmp.eq.s32.totalorder %v1747, 1
      %vm1768 = vcmp.eq.s32.totalorder %v1750, 1
      %vm1769 = vcmp.eq.s32.totalorder %v1753, 1
      %vm1770 = vcmp.eq.s32.totalorder %v1756, 1
      %vm1771 = vcmp.eq.s32.totalorder %v1759, 1
      %vm1772 = vcmp.eq.s32.totalorder %v1762, 1
      %vm1773 = vcmp.eq.s32.totalorder %v1765, 1
      %v1774 = vsel %vm1766, %v1734, 0.0
      %v1775 = vsel %vm1767, %v1735, 0.0
      %v1776 = vsel %vm1768, %v1736, 0.0
      %v1777 = vsel %vm1769, %v1737, 0.0
      %v1778 = vsel %vm1770, %v1738, 0.0
      %v1779 = vsel %vm1771, %v1739, 0.0
      %v1780 = vsel %vm1772, %v1740, 0.0
      %v1781 = vsel %vm1773, %v1741, 0.0
      %s1782 = scalar_lea.vmem %s5, 24
      %v1783 = vld [vmem:[%s1782] sm:$0xf]
      %v1785 = vsel %vm577, %v1774, 0
      %v1788 = vsel %vm577, %v1775, 0
      %v1791 = vsel %vm577, %v1776, 0
      %v1794 = vsel %vm577, %v1777, 0
      %v1797 = vsel %vm577, %v1778, 0
      %v1800 = vsel %vm577, %v1779, 0
      %v1803 = vsel %vm577, %v1780, 0
      %v1806 = vsel %vm577, %v1781, 0
      %v1809 = vsel %vm733, %v1783, 0
      %1811 = vmatprep.subr.mxu0 0.0
      %1812 = vmatpush1.msra.mxu0 0.0
      %1813 = vmatprep.subr.mxu0 0.0
      %1814 = vmatpush1.msra.mxu0 0.0
      %1815 = vmatprep.subr.mxu0 0.0
      %1816 = vmatpush1.msra.mxu0 0.0
      %1817 = vmatprep.subr.mxu0 0.0
      %1818 = vmatpush1.msra.mxu0 0.0
      %1819 = vmatprep.subr.mxu0 0.0
      %1820 = vmatpush1.msra.mxu0 0.0
      %1821 = vmatprep.subr.mxu0 0.0
      %1822 = vmatpush1.msra.mxu0 0.0
      %1823 = vmatprep.subr.mxu0 0.0
      %1824 = vmatpush1.msra.mxu0 0.0
      %1825 = vmatprep.subr.mxu0 0.0
      %1826 = vmatpush1.msra.mxu0 0.0
      %1827 = vmatprep.subr.mxu0 0.0
      %1828 = vmatpush1.msra.mxu0 0.0
      %1829 = vmatprep.subr.mxu0 0.0
      %1830 = vmatpush1.msra.mxu0 0.0
      %1831 = vmatprep.subr.mxu0 0.0
      %1832 = vmatpush1.msra.mxu0 0.0
      %1833 = vmatprep.subr.mxu0 0.0
      %1834 = vmatpush1.msra.mxu0 0.0
      %1835 = vmatprep.subr.mxu0 0.0
      %1836 = vmatpush1.msra.mxu0 0.0
      %1837 = vmatprep.subr.mxu0 0.0
      %1838 = vmatpush1.msra.mxu0 0.0
      %1839 = vmatprep.subr.mxu0 0.0
      %1840 = vmatpush1.msra.mxu0 0.0
      %1841 = vmatprep.subr.mxu0 0.0
      %1842 = vmatpush1.msra.mxu0 %v1809
      %1843 = vmatprep.subr.mxu0 0.0
      %1844 = vmatpush2.msra.mxu0 0.0
      %1845 = vmatprep.subr.mxu0 0.0
      %1846 = vmatpush2.msra.mxu0 0.0
      %1847 = vmatprep.subr.mxu0 0.0
      %1848 = vmatpush2.msra.mxu0 0.0
      %1849 = vmatprep.subr.mxu0 0.0
      %1850 = vmatpush2.msra.mxu0 0.0
      %1851 = vmatprep.subr.mxu0 0.0
      %1852 = vmatpush2.msra.mxu0 0.0
      %1853 = vmatprep.subr.mxu0 0.0
      %1854 = vmatpush2.msra.mxu0 0.0
      %1855 = vmatprep.subr.mxu0 0.0
      %1856 = vmatpush2.msra.mxu0 0.0
      %1857 = vmatprep.subr.mxu0 0.0
      %1858 = vmatpush2.msra.mxu0 0.0
      %1859 = vmatprep.subr.mxu0 0.0
      %1860 = vmatpush2.msra.mxu0 0.0
      %1861 = vmatprep.subr.mxu0 0.0
      %1862 = vmatpush2.msra.mxu0 0.0
      %1863 = vmatprep.subr.mxu0 0.0
      %1864 = vmatpush2.msra.mxu0 0.0
      %1865 = vmatprep.subr.mxu0 0.0
      %1866 = vmatpush2.msra.mxu0 0.0
      %1867 = vmatprep.subr.mxu0 0.0
      %1868 = vmatpush2.msra.mxu0 0.0
      %1869 = vmatprep.subr.mxu0 0.0
      %1870 = vmatpush2.msra.mxu0 0.0
      %1871 = vmatprep.subr.mxu0 0.0
      %1872 = vmatpush2.msra.mxu0 0.0
      %1873 = vmatprep.subr.mxu0 0.0
      %1874 = vmatpush2.msra.mxu0 0.0
      %1875 = vmatprep.mubr.f32.mxu0 0.0
      %1876 = vmatmul.mubr.f32.gmra.mxu0 %v1785
      %v1877 = vpop.f32.mrf.mxu0
      %v1878 = vadd.f32 0.0, %v1877
      %v1879 = vpop.f32.mrf.mxu0
      %1880 = vmatprep.mubr.f32.mxu0 0.0
      %1881 = vmatmul.mubr.f32.gmra.mxu0 %v1788
      %v1882 = vpop.f32.mrf.mxu0
      %v1883 = vadd.f32 0.0, %v1882
      %v1884 = vpop.f32.mrf.mxu0
      %1885 = vmatprep.mubr.f32.mxu0 0.0
      %1886 = vmatmul.mubr.f32.gmra.mxu0 %v1791
      %v1887 = vpop.f32.mrf.mxu0
      %v1888 = vadd.f32 0.0, %v1887
      %v1889 = vpop.f32.mrf.mxu0
      %1890 = vmatprep.mubr.f32.mxu0 0.0
      %1891 = vmatmul.mubr.f32.gmra.mxu0 %v1794
      %v1892 = vpop.f32.mrf.mxu0
      %v1893 = vadd.f32 0.0, %v1892
      %v1894 = vpop.f32.mrf.mxu0
      %1895 = vmatprep.mubr.f32.mxu0 0.0
      %1896 = vmatmul.mubr.f32.gmra.mxu0 %v1797
      %v1897 = vpop.f32.mrf.mxu0
      %v1898 = vadd.f32 0.0, %v1897
      %v1899 = vpop.f32.mrf.mxu0
      %1900 = vmatprep.mubr.f32.mxu0 0.0
      %1901 = vmatmul.mubr.f32.gmra.mxu0 %v1800
      %v1902 = vpop.f32.mrf.mxu0
      %v1903 = vadd.f32 0.0, %v1902
      %v1904 = vpop.f32.mrf.mxu0
      %1905 = vmatprep.mubr.f32.mxu0 0.0
      %1906 = vmatmul.mubr.f32.gmra.mxu0 %v1803
      %v1907 = vpop.f32.mrf.mxu0
      %v1908 = vadd.f32 0.0, %v1907
      %v1909 = vpop.f32.mrf.mxu0
      %1910 = vmatprep.mubr.f32.mxu0 0.0
      %1911 = vmatmul.mubr.f32.gmra.mxu0 %v1806
      %v1912 = vpop.f32.mrf.mxu0
      %v1913 = vadd.f32 0.0, %v1912
      %v1914 = vpop.f32.mrf.mxu0
      %1915 = vdwg.mxu0
      %v1916 = vadd.f32 %v1726, %v1878
      %v1917 = vadd.f32 %v1727, %v1883
      %v1918 = vadd.f32 %v1728, %v1888
      %v1919 = vadd.f32 %v1729, %v1893
      %v1920 = vadd.f32 %v1730, %v1898
      %v1921 = vadd.f32 %v1731, %v1903
      %v1922 = vadd.f32 %v1732, %v1908
      %v1923 = vadd.f32 %v1733, %v1913
      %v1924 = vld [vmem:[#allocation2 + $0x18] sm:$0xff]
      %v1925 = vld [vmem:[#allocation2 + $0x20] sm:$0xff]
      %v1926 = vld [vmem:[#allocation2 + $0x28] sm:$0xff]
      %v1927 = vld [vmem:[#allocation2 + $0x30] sm:$0xff]
      %v1928 = vld [vmem:[#allocation2 + $0x38] sm:$0xff]
      %v1929 = vld [vmem:[#allocation2 + $0x40] sm:$0xff]
      %v1930 = vld [vmem:[#allocation2 + $0x48] sm:$0xff]
      %v1931 = vld [vmem:[#allocation2 + $0x50] sm:$0xff]
      %1932 = vset.pattern.permute.xlu0 7
      %1933 = vperm.xlu0 %1932, %v610
      %v1934 = vpop.permute.xlu0 %1933
      %1935 = vset.pattern.permute.xlu0 7
      %1936 = vperm.xlu0 %1935, %v611
      %v1937 = vpop.permute.xlu0 %1936
      %1938 = vset.pattern.permute.xlu0 7
      %1939 = vperm.xlu0 %1938, %v612
      %v1940 = vpop.permute.xlu0 %1939
      %1941 = vset.pattern.permute.xlu0 7
      %1942 = vperm.xlu0 %1941, %v613
      %v1943 = vpop.permute.xlu0 %1942
      %1944 = vset.pattern.permute.xlu0 7
      %1945 = vperm.xlu0 %1944, %v614
      %v1946 = vpop.permute.xlu0 %1945
      %1947 = vset.pattern.permute.xlu0 7
      %1948 = vperm.xlu0 %1947, %v615
      %v1949 = vpop.permute.xlu0 %1948
      %1950 = vset.pattern.permute.xlu0 7
      %1951 = vperm.xlu0 %1950, %v616
      %v1952 = vpop.permute.xlu0 %1951
      %1953 = vset.pattern.permute.xlu0 7
      %1954 = vperm.xlu0 %1953, %v617
      %v1955 = vpop.permute.xlu0 %1954
      %vm1956 = vcmp.eq.s32.totalorder %v1934, 1
      %vm1957 = vcmp.eq.s32.totalorder %v1937, 1
      %vm1958 = vcmp.eq.s32.totalorder %v1940, 1
      %vm1959 = vcmp.eq.s32.totalorder %v1943, 1
      %vm1960 = vcmp.eq.s32.totalorder %v1946, 1
      %vm1961 = vcmp.eq.s32.totalorder %v1949, 1
      %vm1962 = vcmp.eq.s32.totalorder %v1952, 1
      %vm1963 = vcmp.eq.s32.totalorder %v1955, 1
      %v1964 = vsel %vm1956, %v1924, 0.0
      %v1965 = vsel %vm1957, %v1925, 0.0
      %v1966 = vsel %vm1958, %v1926, 0.0
      %v1967 = vsel %vm1959, %v1927, 0.0
      %v1968 = vsel %vm1960, %v1928, 0.0
      %v1969 = vsel %vm1961, %v1929, 0.0
      %v1970 = vsel %vm1962, %v1930, 0.0
      %v1971 = vsel %vm1963, %v1931, 0.0
      %s1972 = scalar_lea.vmem %s5, 28
      %v1973 = vld [vmem:[%s1972] sm:$0xf]
      %v1975 = vsel %vm577, %v1964, 0
      %v1978 = vsel %vm577, %v1965, 0
      %v1981 = vsel %vm577, %v1966, 0
      %v1984 = vsel %vm577, %v1967, 0
      %v1987 = vsel %vm577, %v1968, 0
      %v1990 = vsel %vm577, %v1969, 0
      %v1993 = vsel %vm577, %v1970, 0
      %v1996 = vsel %vm577, %v1971, 0
      %v1999 = vsel %vm733, %v1973, 0
      %2001 = vmatprep.subr.mxu0 0.0
      %2002 = vmatpush1.msra.mxu0 0.0
      %2003 = vmatprep.subr.mxu0 0.0
      %2004 = vmatpush1.msra.mxu0 0.0
      %2005 = vmatprep.subr.mxu0 0.0
      %2006 = vmatpush1.msra.mxu0 0.0
      %2007 = vmatprep.subr.mxu0 0.0
      %2008 = vmatpush1.msra.mxu0 0.0
      %2009 = vmatprep.subr.mxu0 0.0
      %2010 = vmatpush1.msra.mxu0 0.0
      %2011 = vmatprep.subr.mxu0 0.0
      %2012 = vmatpush1.msra.mxu0 0.0
      %2013 = vmatprep.subr.mxu0 0.0
      %2014 = vmatpush1.msra.mxu0 0.0
      %2015 = vmatprep.subr.mxu0 0.0
      %2016 = vmatpush1.msra.mxu0 0.0
      %2017 = vmatprep.subr.mxu0 0.0
      %2018 = vmatpush1.msra.mxu0 0.0
      %2019 = vmatprep.subr.mxu0 0.0
      %2020 = vmatpush1.msra.mxu0 0.0
      %2021 = vmatprep.subr.mxu0 0.0
      %2022 = vmatpush1.msra.mxu0 0.0
      %2023 = vmatprep.subr.mxu0 0.0
      %2024 = vmatpush1.msra.mxu0 0.0
      %2025 = vmatprep.subr.mxu0 0.0
      %2026 = vmatpush1.msra.mxu0 0.0
      %2027 = vmatprep.subr.mxu0 0.0
      %2028 = vmatpush1.msra.mxu0 0.0
      %2029 = vmatprep.subr.mxu0 0.0
      %2030 = vmatpush1.msra.mxu0 0.0
      %2031 = vmatprep.subr.mxu0 0.0
      %2032 = vmatpush1.msra.mxu0 %v1999
      %2033 = vmatprep.subr.mxu0 0.0
      %2034 = vmatpush2.msra.mxu0 0.0
      %2035 = vmatprep.subr.mxu0 0.0
      %2036 = vmatpush2.msra.mxu0 0.0
      %2037 = vmatprep.subr.mxu0 0.0
      %2038 = vmatpush2.msra.mxu0 0.0
      %2039 = vmatprep.subr.mxu0 0.0
      %2040 = vmatpush2.msra.mxu0 0.0
      %2041 = vmatprep.subr.mxu0 0.0
      %2042 = vmatpush2.msra.mxu0 0.0
      %2043 = vmatprep.subr.mxu0 0.0
      %2044 = vmatpush2.msra.mxu0 0.0
      %2045 = vmatprep.subr.mxu0 0.0
      %2046 = vmatpush2.msra.mxu0 0.0
      %2047 = vmatprep.subr.mxu0 0.0
      %2048 = vmatpush2.msra.mxu0 0.0
      %2049 = vmatprep.subr.mxu0 0.0
      %2050 = vmatpush2.msra.mxu0 0.0
      %2051 = vmatprep.subr.mxu0 0.0
      %2052 = vmatpush2.msra.mxu0 0.0
      %2053 = vmatprep.subr.mxu0 0.0
      %2054 = vmatpush2.msra.mxu0 0.0
      %2055 = vmatprep.subr.mxu0 0.0
      %2056 = vmatpush2.msra.mxu0 0.0
      %2057 = vmatprep.subr.mxu0 0.0
      %2058 = vmatpush2.msra.mxu0 0.0
      %2059 = vmatprep.subr.mxu0 0.0
      %2060 = vmatpush2.msra.mxu0 0.0
      %2061 = vmatprep.subr.mxu0 0.0
      %2062 = vmatpush2.msra.mxu0 0.0
      %2063 = vmatprep.subr.mxu0 0.0
      %2064 = vmatpush2.msra.mxu0 0.0
      %2065 = vmatprep.mubr.f32.mxu0 0.0
      %2066 = vmatmul.mubr.f32.gmra.mxu0 %v1975
      %v2067 = vpop.f32.mrf.mxu0
      %v2068 = vadd.f32 0.0, %v2067
      %v2069 = vpop.f32.mrf.mxu0
      %2070 = vmatprep.mubr.f32.mxu0 0.0
      %2071 = vmatmul.mubr.f32.gmra.mxu0 %v1978
      %v2072 = vpop.f32.mrf.mxu0
      %v2073 = vadd.f32 0.0, %v2072
      %v2074 = vpop.f32.mrf.mxu0
      %2075 = vmatprep.mubr.f32.mxu0 0.0
      %2076 = vmatmul.mubr.f32.gmra.mxu0 %v1981
      %v2077 = vpop.f32.mrf.mxu0
      %v2078 = vadd.f32 0.0, %v2077
      %v2079 = vpop.f32.mrf.mxu0
      %2080 = vmatprep.mubr.f32.mxu0 0.0
      %2081 = vmatmul.mubr.f32.gmra.mxu0 %v1984
      %v2082 = vpop.f32.mrf.mxu0
      %v2083 = vadd.f32 0.0, %v2082
      %v2084 = vpop.f32.mrf.mxu0
      %2085 = vmatprep.mubr.f32.mxu0 0.0
      %2086 = vmatmul.mubr.f32.gmra.mxu0 %v1987
      %v2087 = vpop.f32.mrf.mxu0
      %v2088 = vadd.f32 0.0, %v2087
      %v2089 = vpop.f32.mrf.mxu0
      %2090 = vmatprep.mubr.f32.mxu0 0.0
      %2091 = vmatmul.mubr.f32.gmra.mxu0 %v1990
      %v2092 = vpop.f32.mrf.mxu0
      %v2093 = vadd.f32 0.0, %v2092
      %v2094 = vpop.f32.mrf.mxu0
      %2095 = vmatprep.mubr.f32.mxu0 0.0
      %2096 = vmatmul.mubr.f32.gmra.mxu0 %v1993
      %v2097 = vpop.f32.mrf.mxu0
      %v2098 = vadd.f32 0.0, %v2097
      %v2099 = vpop.f32.mrf.mxu0
      %2100 = vmatprep.mubr.f32.mxu0 0.0
      %2101 = vmatmul.mubr.f32.gmra.mxu0 %v1996
      %v2102 = vpop.f32.mrf.mxu0
      %v2103 = vadd.f32 0.0, %v2102
      %v2104 = vpop.f32.mrf.mxu0
      %2105 = vdwg.mxu0
      %v2106 = vadd.f32 %v1916, %v2068
      %v2107 = vadd.f32 %v1917, %v2073
      %v2108 = vadd.f32 %v1918, %v2078
      %v2109 = vadd.f32 %v1919, %v2083
      %v2110 = vadd.f32 %v1920, %v2088
      %v2111 = vadd.f32 %v1921, %v2093
      %v2112 = vadd.f32 %v1922, %v2098
      %v2113 = vadd.f32 %v1923, %v2103
      %v2114 = vld [vmem:[#allocation2 + $0x19] sm:$0xff]
      %v2115 = vld [vmem:[#allocation2 + $0x21] sm:$0xff]
      %v2116 = vld [vmem:[#allocation2 + $0x29] sm:$0xff]
      %v2117 = vld [vmem:[#allocation2 + $0x31] sm:$0xff]
      %v2118 = vld [vmem:[#allocation2 + $0x39] sm:$0xff]
      %v2119 = vld [vmem:[#allocation2 + $0x41] sm:$0xff]
      %v2120 = vld [vmem:[#allocation2 + $0x49] sm:$0xff]
      %v2121 = vld [vmem:[#allocation2 + $0x51] sm:$0xff]
      %2122 = vset.pattern.permute.xlu0 8
      %2123 = vperm.xlu0 %2122, %v610
      %v2124 = vpop.permute.xlu0 %2123
      %2125 = vset.pattern.permute.xlu0 8
      %2126 = vperm.xlu0 %2125, %v611
      %v2127 = vpop.permute.xlu0 %2126
      %2128 = vset.pattern.permute.xlu0 8
      %2129 = vperm.xlu0 %2128, %v612
      %v2130 = vpop.permute.xlu0 %2129
      %2131 = vset.pattern.permute.xlu0 8
      %2132 = vperm.xlu0 %2131, %v613
      %v2133 = vpop.permute.xlu0 %2132
      %2134 = vset.pattern.permute.xlu0 8
      %2135 = vperm.xlu0 %2134, %v614
      %v2136 = vpop.permute.xlu0 %2135
      %2137 = vset.pattern.permute.xlu0 8
      %2138 = vperm.xlu0 %2137, %v615
      %v2139 = vpop.permute.xlu0 %2138
      %2140 = vset.pattern.permute.xlu0 8
      %2141 = vperm.xlu0 %2140, %v616
      %v2142 = vpop.permute.xlu0 %2141
      %2143 = vset.pattern.permute.xlu0 8
      %2144 = vperm.xlu0 %2143, %v617
      %v2145 = vpop.permute.xlu0 %2144
      %vm2146 = vcmp.eq.s32.totalorder %v2124, 1
      %vm2147 = vcmp.eq.s32.totalorder %v2127, 1
      %vm2148 = vcmp.eq.s32.totalorder %v2130, 1
      %vm2149 = vcmp.eq.s32.totalorder %v2133, 1
      %vm2150 = vcmp.eq.s32.totalorder %v2136, 1
      %vm2151 = vcmp.eq.s32.totalorder %v2139, 1
      %vm2152 = vcmp.eq.s32.totalorder %v2142, 1
      %vm2153 = vcmp.eq.s32.totalorder %v2145, 1
      %v2154 = vsel %vm2146, %v2114, 0.0
      %v2155 = vsel %vm2147, %v2115, 0.0
      %v2156 = vsel %vm2148, %v2116, 0.0
      %v2157 = vsel %vm2149, %v2117, 0.0
      %v2158 = vsel %vm2150, %v2118, 0.0
      %v2159 = vsel %vm2151, %v2119, 0.0
      %v2160 = vsel %vm2152, %v2120, 0.0
      %v2161 = vsel %vm2153, %v2121, 0.0
      %s2162 = scalar_lea.vmem %s5, 32
      %v2163 = vld [vmem:[%s2162] sm:$0xf]
      %v2165 = vsel %vm577, %v2154, 0
      %v2168 = vsel %vm577, %v2155, 0
      %v2171 = vsel %vm577, %v2156, 0
      %v2174 = vsel %vm577, %v2157, 0
      %v2177 = vsel %vm577, %v2158, 0
      %v2180 = vsel %vm577, %v2159, 0
      %v2183 = vsel %vm577, %v2160, 0
      %v2186 = vsel %vm577, %v2161, 0
      %v2189 = vsel %vm733, %v2163, 0
      %2191 = vmatprep.subr.mxu0 0.0
      %2192 = vmatpush1.msra.mxu0 0.0
      %2193 = vmatprep.subr.mxu0 0.0
      %2194 = vmatpush1.msra.mxu0 0.0
      %2195 = vmatprep.subr.mxu0 0.0
      %2196 = vmatpush1.msra.mxu0 0.0
      %2197 = vmatprep.subr.mxu0 0.0
      %2198 = vmatpush1.msra.mxu0 0.0
      %2199 = vmatprep.subr.mxu0 0.0
      %2200 = vmatpush1.msra.mxu0 0.0
      %2201 = vmatprep.subr.mxu0 0.0
      %2202 = vmatpush1.msra.mxu0 0.0
      %2203 = vmatprep.subr.mxu0 0.0
      %2204 = vmatpush1.msra.mxu0 0.0
      %2205 = vmatprep.subr.mxu0 0.0
      %2206 = vmatpush1.msra.mxu0 0.0
      %2207 = vmatprep.subr.mxu0 0.0
      %2208 = vmatpush1.msra.mxu0 0.0
      %2209 = vmatprep.subr.mxu0 0.0
      %2210 = vmatpush1.msra.mxu0 0.0
      %2211 = vmatprep.subr.mxu0 0.0
      %2212 = vmatpush1.msra.mxu0 0.0
      %2213 = vmatprep.subr.mxu0 0.0
      %2214 = vmatpush1.msra.mxu0 0.0
      %2215 = vmatprep.subr.mxu0 0.0
      %2216 = vmatpush1.msra.mxu0 0.0
      %2217 = vmatprep.subr.mxu0 0.0
      %2218 = vmatpush1.msra.mxu0 0.0
      %2219 = vmatprep.subr.mxu0 0.0
      %2220 = vmatpush1.msra.mxu0 0.0
      %2221 = vmatprep.subr.mxu0 0.0
      %2222 = vmatpush1.msra.mxu0 %v2189
      %2223 = vmatprep.subr.mxu0 0.0
      %2224 = vmatpush2.msra.mxu0 0.0
      %2225 = vmatprep.subr.mxu0 0.0
      %2226 = vmatpush2.msra.mxu0 0.0
      %2227 = vmatprep.subr.mxu0 0.0
      %2228 = vmatpush2.msra.mxu0 0.0
      %2229 = vmatprep.subr.mxu0 0.0
      %2230 = vmatpush2.msra.mxu0 0.0
      %2231 = vmatprep.subr.mxu0 0.0
      %2232 = vmatpush2.msra.mxu0 0.0
      %2233 = vmatprep.subr.mxu0 0.0
      %2234 = vmatpush2.msra.mxu0 0.0
      %2235 = vmatprep.subr.mxu0 0.0
      %2236 = vmatpush2.msra.mxu0 0.0
      %2237 = vmatprep.subr.mxu0 0.0
      %2238 = vmatpush2.msra.mxu0 0.0
      %2239 = vmatprep.subr.mxu0 0.0
      %2240 = vmatpush2.msra.mxu0 0.0
      %2241 = vmatprep.subr.mxu0 0.0
      %2242 = vmatpush2.msra.mxu0 0.0
      %2243 = vmatprep.subr.mxu0 0.0
      %2244 = vmatpush2.msra.mxu0 0.0
      %2245 = vmatprep.subr.mxu0 0.0
      %2246 = vmatpush2.msra.mxu0 0.0
      %2247 = vmatprep.subr.mxu0 0.0
      %2248 = vmatpush2.msra.mxu0 0.0
      %2249 = vmatprep.subr.mxu0 0.0
      %2250 = vmatpush2.msra.mxu0 0.0
      %2251 = vmatprep.subr.mxu0 0.0
      %2252 = vmatpush2.msra.mxu0 0.0
      %2253 = vmatprep.subr.mxu0 0.0
      %2254 = vmatpush2.msra.mxu0 0.0
      %2255 = vmatprep.mubr.f32.mxu0 0.0
      %2256 = vmatmul.mubr.f32.gmra.mxu0 %v2165
      %v2257 = vpop.f32.mrf.mxu0
      %v2258 = vadd.f32 0.0, %v2257
      %v2259 = vpop.f32.mrf.mxu0
      %2260 = vmatprep.mubr.f32.mxu0 0.0
      %2261 = vmatmul.mubr.f32.gmra.mxu0 %v2168
      %v2262 = vpop.f32.mrf.mxu0
      %v2263 = vadd.f32 0.0, %v2262
      %v2264 = vpop.f32.mrf.mxu0
      %2265 = vmatprep.mubr.f32.mxu0 0.0
      %2266 = vmatmul.mubr.f32.gmra.mxu0 %v2171
      %v2267 = vpop.f32.mrf.mxu0
      %v2268 = vadd.f32 0.0, %v2267
      %v2269 = vpop.f32.mrf.mxu0
      %2270 = vmatprep.mubr.f32.mxu0 0.0
      %2271 = vmatmul.mubr.f32.gmra.mxu0 %v2174
      %v2272 = vpop.f32.mrf.mxu0
      %v2273 = vadd.f32 0.0, %v2272
      %v2274 = vpop.f32.mrf.mxu0
      %2275 = vmatprep.mubr.f32.mxu0 0.0
      %2276 = vmatmul.mubr.f32.gmra.mxu0 %v2177
      %v2277 = vpop.f32.mrf.mxu0
      %v2278 = vadd.f32 0.0, %v2277
      %v2279 = vpop.f32.mrf.mxu0
      %2280 = vmatprep.mubr.f32.mxu0 0.0
      %2281 = vmatmul.mubr.f32.gmra.mxu0 %v2180
      %v2282 = vpop.f32.mrf.mxu0
      %v2283 = vadd.f32 0.0, %v2282
      %v2284 = vpop.f32.mrf.mxu0
      %2285 = vmatprep.mubr.f32.mxu0 0.0
      %2286 = vmatmul.mubr.f32.gmra.mxu0 %v2183
      %v2287 = vpop.f32.mrf.mxu0
      %v2288 = vadd.f32 0.0, %v2287
      %v2289 = vpop.f32.mrf.mxu0
      %2290 = vmatprep.mubr.f32.mxu0 0.0
      %2291 = vmatmul.mubr.f32.gmra.mxu0 %v2186
      %v2292 = vpop.f32.mrf.mxu0
      %v2293 = vadd.f32 0.0, %v2292
      %v2294 = vpop.f32.mrf.mxu0
      %2295 = vdwg.mxu0
      %v2296 = vadd.f32 %v2106, %v2258
      %v2297 = vadd.f32 %v2107, %v2263
      %v2298 = vadd.f32 %v2108, %v2268
      %v2299 = vadd.f32 %v2109, %v2273
      %v2300 = vadd.f32 %v2110, %v2278
      %v2301 = vadd.f32 %v2111, %v2283
      %v2302 = vadd.f32 %v2112, %v2288
      %v2303 = vadd.f32 %v2113, %v2293
      %v2304 = vld [vmem:[%s6] sm:$0x1]
      %v2306 = vlaneseq
      %v2307 = vshrl.u32 %v2306, 7
      %v2308 = vsub.s32 0, %v2307
      %v2309 = vrot.slane %v2304, %v2308
      %v2311 = vmul.f32 %v2296, %v2309
      %v2312 = vmul.f32 %v2297, %v2309
      %v2313 = vmul.f32 %v2298, %v2309
      %v2314 = vmul.f32 %v2299, %v2309
      %v2315 = vmul.f32 %v2300, %v2309
      %v2316 = vmul.f32 %v2301, %v2309
      %v2317 = vmul.f32 %v2302, %v2309
      %v2318 = vmul.f32 %v2303, %v2309
      %v2319 = vld [vmem:[%s7] sm:$0x1]
      %v2321 = vlaneseq
      %v2322 = vshrl.u32 %v2321, 7
      %v2323 = vsub.s32 0, %v2322
      %v2324 = vrot.slane %v2319, %v2323
      %v2326 = vadd.f32 %v2311, %v2324
      %v2327 = vadd.f32 %v2312, %v2324
      %v2328 = vadd.f32 %v2313, %v2324
      %v2329 = vadd.f32 %v2314, %v2324
      %v2330 = vadd.f32 %v2315, %v2324
      %v2331 = vadd.f32 %v2316, %v2324
      %v2332 = vadd.f32 %v2317, %v2324
      %v2333 = vadd.f32 %v2318, %v2324
      %v2334 = vmax.f32 %v2326, 0.0
      %v2335 = vmax.f32 %v2327, 0.0
      %v2336 = vmax.f32 %v2328, 0.0
      %v2337 = vmax.f32 %v2329, 0.0
      %v2338 = vmax.f32 %v2330, 0.0
      %v2339 = vmax.f32 %v2331, 0.0
      %v2340 = vmax.f32 %v2332, 0.0
      %v2341 = vmax.f32 %v2333, 0.0
      %v2342 = vld [vmem:[%s8] sm:$0xf]
      %v2344 = vsel %vm577, %v2334, 0
      %v2347 = vsel %vm577, %v2335, 0
      %v2350 = vsel %vm577, %v2336, 0
      %v2353 = vsel %vm577, %v2337, 0
      %v2356 = vsel %vm577, %v2338, 0
      %v2359 = vsel %vm577, %v2339, 0
      %v2362 = vsel %vm577, %v2340, 0
      %v2365 = vsel %vm577, %v2341, 0
      %v2368 = vsel %vm733, %v2342, 0
      %2370 = vmatprep.subr.mxu0 0.0
      %2371 = vmatpush1.msra.mxu0 0.0
      %2372 = vmatprep.subr.mxu0 0.0
      %2373 = vmatpush1.msra.mxu0 0.0
      %2374 = vmatprep.subr.mxu0 0.0
      %2375 = vmatpush1.msra.mxu0 0.0
      %2376 = vmatprep.subr.mxu0 0.0
      %2377 = vmatpush1.msra.mxu0 0.0
      %2378 = vmatprep.subr.mxu0 0.0
      %2379 = vmatpush1.msra.mxu0 0.0
      %2380 = vmatprep.subr.mxu0 0.0
      %2381 = vmatpush1.msra.mxu0 0.0
      %2382 = vmatprep.subr.mxu0 0.0
      %2383 = vmatpush1.msra.mxu0 0.0
      %2384 = vmatprep.subr.mxu0 0.0
      %2385 = vmatpush1.msra.mxu0 0.0
      %2386 = vmatprep.subr.mxu0 0.0
      %2387 = vmatpush1.msra.mxu0 0.0
      %2388 = vmatprep.subr.mxu0 0.0
      %2389 = vmatpush1.msra.mxu0 0.0
      %2390 = vmatprep.subr.mxu0 0.0
      %2391 = vmatpush1.msra.mxu0 0.0
      %2392 = vmatprep.subr.mxu0 0.0
      %2393 = vmatpush1.msra.mxu0 0.0
      %2394 = vmatprep.subr.mxu0 0.0
      %2395 = vmatpush1.msra.mxu0 0.0
      %2396 = vmatprep.subr.mxu0 0.0
      %2397 = vmatpush1.msra.mxu0 0.0
      %2398 = vmatprep.subr.mxu0 0.0
      %2399 = vmatpush1.msra.mxu0 0.0
      %2400 = vmatprep.subr.mxu0 0.0
      %2401 = vmatpush1.msra.mxu0 %v2368
      %2402 = vmatprep.subr.mxu0 0.0
      %2403 = vmatpush2.msra.mxu0 0.0
      %2404 = vmatprep.subr.mxu0 0.0
      %2405 = vmatpush2.msra.mxu0 0.0
      %2406 = vmatprep.subr.mxu0 0.0
      %2407 = vmatpush2.msra.mxu0 0.0
      %2408 = vmatprep.subr.mxu0 0.0
      %2409 = vmatpush2.msra.mxu0 0.0
      %2410 = vmatprep.subr.mxu0 0.0
      %2411 = vmatpush2.msra.mxu0 0.0
      %2412 = vmatprep.subr.mxu0 0.0
      %2413 = vmatpush2.msra.mxu0 0.0
      %2414 = vmatprep.subr.mxu0 0.0
      %2415 = vmatpush2.msra.mxu0 0.0
      %2416 = vmatprep.subr.mxu0 0.0
      %2417 = vmatpush2.msra.mxu0 0.0
      %2418 = vmatprep.subr.mxu0 0.0
      %2419 = vmatpush2.msra.mxu0 0.0
      %2420 = vmatprep.subr.mxu0 0.0
      %2421 = vmatpush2.msra.mxu0 0.0
      %2422 = vmatprep.subr.mxu0 0.0
      %2423 = vmatpush2.msra.mxu0 0.0
      %2424 = vmatprep.subr.mxu0 0.0
      %2425 = vmatpush2.msra.mxu0 0.0
      %2426 = vmatprep.subr.mxu0 0.0
      %2427 = vmatpush2.msra.mxu0 0.0
      %2428 = vmatprep.subr.mxu0 0.0
      %2429 = vmatpush2.msra.mxu0 0.0
      %2430 = vmatprep.subr.mxu0 0.0
      %2431 = vmatpush2.msra.mxu0 0.0
      %2432 = vmatprep.subr.mxu0 0.0
      %2433 = vmatpush2.msra.mxu0 0.0
      %2434 = vmatprep.mubr.f32.mxu0 0.0
      %2435 = vmatmul.mubr.f32.gmra.mxu0 %v2344
      %v2436 = vpop.f32.mrf.mxu0
      %v2437 = vadd.f32 0.0, %v2436
      %v2438 = vpop.f32.mrf.mxu0
      %2439 = vmatprep.mubr.f32.mxu0 0.0
      %2440 = vmatmul.mubr.f32.gmra.mxu0 %v2347
      %v2441 = vpop.f32.mrf.mxu0
      %v2442 = vadd.f32 0.0, %v2441
      %v2443 = vpop.f32.mrf.mxu0
      %2444 = vmatprep.mubr.f32.mxu0 0.0
      %2445 = vmatmul.mubr.f32.gmra.mxu0 %v2350
      %v2446 = vpop.f32.mrf.mxu0
      %v2447 = vadd.f32 0.0, %v2446
      %v2448 = vpop.f32.mrf.mxu0
      %2449 = vmatprep.mubr.f32.mxu0 0.0
      %2450 = vmatmul.mubr.f32.gmra.mxu0 %v2353
      %v2451 = vpop.f32.mrf.mxu0
      %v2452 = vadd.f32 0.0, %v2451
      %v2453 = vpop.f32.mrf.mxu0
      %2454 = vmatprep.mubr.f32.mxu0 0.0
      %2455 = vmatmul.mubr.f32.gmra.mxu0 %v2356
      %v2456 = vpop.f32.mrf.mxu0
      %v2457 = vadd.f32 0.0, %v2456
      %v2458 = vpop.f32.mrf.mxu0
      %2459 = vmatprep.mubr.f32.mxu0 0.0
      %2460 = vmatmul.mubr.f32.gmra.mxu0 %v2359
      %v2461 = vpop.f32.mrf.mxu0
      %v2462 = vadd.f32 0.0, %v2461
      %v2463 = vpop.f32.mrf.mxu0
      %2464 = vmatprep.mubr.f32.mxu0 0.0
      %2465 = vmatmul.mubr.f32.gmra.mxu0 %v2362
      %v2466 = vpop.f32.mrf.mxu0
      %v2467 = vadd.f32 0.0, %v2466
      %v2468 = vpop.f32.mrf.mxu0
      %2469 = vmatprep.mubr.f32.mxu0 0.0
      %2470 = vmatmul.mubr.f32.gmra.mxu0 %v2365
      %v2471 = vpop.f32.mrf.mxu0
      %v2472 = vadd.f32 0.0, %v2471
      %v2473 = vpop.f32.mrf.mxu0
      %2474 = vdwg.mxu0
      %v2475 = vld [vmem:[%s9] sm:$0x1]
      %v2477 = vlaneseq
      %v2478 = vshrl.u32 %v2477, 7
      %v2479 = vsub.s32 0, %v2478
      %v2480 = vrot.slane %v2475, %v2479
      %v2482 = vmul.f32 %v2437, %v2480
      %v2483 = vmul.f32 %v2442, %v2480
      %v2484 = vmul.f32 %v2447, %v2480
      %v2485 = vmul.f32 %v2452, %v2480
      %v2486 = vmul.f32 %v2457, %v2480
      %v2487 = vmul.f32 %v2462, %v2480
      %v2488 = vmul.f32 %v2467, %v2480
      %v2489 = vmul.f32 %v2472, %v2480
      %v2490 = vld [vmem:[%s10] sm:$0x1]
      %v2492 = vlaneseq
      %v2493 = vshrl.u32 %v2492, 7
      %v2494 = vsub.s32 0, %v2493
      %v2495 = vrot.slane %v2490, %v2494
      %v2497 = vadd.f32 %v2482, %v2495
      %v2498 = vadd.f32 %v2483, %v2495
      %v2499 = vadd.f32 %v2484, %v2495
      %v2500 = vadd.f32 %v2485, %v2495
      %v2501 = vadd.f32 %v2486, %v2495
      %v2502 = vadd.f32 %v2487, %v2495
      %v2503 = vadd.f32 %v2488, %v2495
      %v2504 = vadd.f32 %v2489, %v2495
      %v2505 = vld [vmem:[%s382] sm:$0xff]
      %v2506 = vld [vmem:[%s382 + $0x8] sm:$0xff]
      %v2507 = vld [vmem:[%s382 + $0x10] sm:$0xff]
      %v2508 = vld [vmem:[%s382 + $0x18] sm:$0xff]
      %v2509 = vld [vmem:[%s382 + $0x20] sm:$0xff]
      %v2510 = vld [vmem:[%s382 + $0x28] sm:$0xff]
      %v2511 = vld [vmem:[%s382 + $0x30] sm:$0xff]
      %v2512 = vld [vmem:[%s382 + $0x38] sm:$0xff]
      %v2513 = vadd.f32 %v2497, %v2505
      %v2514 = vadd.f32 %v2498, %v2506
      %v2515 = vadd.f32 %v2499, %v2507
      %v2516 = vadd.f32 %v2500, %v2508
      %v2517 = vadd.f32 %v2501, %v2509
      %v2518 = vadd.f32 %v2502, %v2510
      %v2519 = vadd.f32 %v2503, %v2511
      %v2520 = vadd.f32 %v2504, %v2512
      %v2521 = vmax.f32 %v2513, 0.0
      %v2522 = vmax.f32 %v2514, 0.0
      %v2523 = vmax.f32 %v2515, 0.0
      %v2524 = vmax.f32 %v2516, 0.0
      %v2525 = vmax.f32 %v2517, 0.0
      %v2526 = vmax.f32 %v2518, 0.0
      %v2527 = vmax.f32 %v2519, 0.0
      %v2528 = vmax.f32 %v2520, 0.0
      %2529 = vst.msk [vmem:[%s388] sm:$0xff] %vm409, %v2521
      %2530 = vst.msk [vmem:[%s388 + $0x8] sm:$0xff] %vm409, %v2522
      %2531 = vst.msk [vmem:[%s388 + $0x10] sm:$0xff] %vm409, %v2523
      %2532 = vst.msk [vmem:[%s388 + $0x18] sm:$0xff] %vm409, %v2524
      %2533 = vst.msk [vmem:[%s388 + $0x20] sm:$0xff] %vm409, %v2525
      %2534 = vst.msk [vmem:[%s388 + $0x28] sm:$0xff] %vm409, %v2526
      %2535 = vst.msk [vmem:[%s388 + $0x30] sm:$0xff] %vm409, %v2527
      %2536 = vst.msk [vmem:[%s388 + $0x38] sm:$0xff] %vm409, %v2528
      %s2537 = smul.u32 8, %s22
      %p2538 = scmp.lt.s32.totalorder %s2537, 15
      %s2539 = scalar_select %p2538, %s2537, 15
      %s2540 = smul.addr %s2539, 8
      %s2541 = scalar_lea.vmem %s11, %s2540
      // Predicated region
      $region69: #{tpu_custom_call.1} parent=63 // pred_check
        %p2542 = pneg %p276
      $region70: #{tpu_custom_call.1} parent=63 // pred_check_branch
        %2544 = sbr.rel (%p2542) target = $region72
      $region71: #{tpu_custom_call.1} parent=63 // pred_region
        %s2545 = smul.u32 8, %s22
      $region72: #{tpu_custom_call.1} parent=63 // pred_fallthru
        _
    $region64: #{tpu_custom_call.1} parent=5 // pred_fallthru
      _
    %p2546 = scmp.le.s32.totalorder 2, %s17
    // Predicated region
    $region73: #{tpu_custom_call.1} parent=5 // pred_check
      %p2547 = pneg %p2546
    $region74: #{tpu_custom_call.1} parent=5 // pred_check_branch
      %2549 = sbr.rel (%p2547) target = $region76
    $region75: #{tpu_custom_call.1} parent=5 // pred_region
      %s2550 = ssub.s32 %s17, 2
      // Predicated region
      $region77: #{tpu_custom_call.1} parent=75 // pred_check
        %p2551 = pneg %p282
      $region78: #{tpu_custom_call.1} parent=75 // pred_check_branch
        %2553 = sbr.rel (%p2551) target = $region80
      $region79: #{tpu_custom_call.1} parent=75 // pred_region
        %s2554 = smul.u32 8, %s23
        %p2555 = scmp.lt.s32.totalorder %s2554, 15
        %s2556 = scalar_select %p2555, %s2554, 15
        %s2557 = smul.addr %s2556, 8
        %s2558 = scalar_lea.vmem %s11, %s2557
      $region80: #{tpu_custom_call.1} parent=75 // pred_fallthru
        _
    $region76: #{tpu_custom_call.1} parent=5 // pred_fallthru
      _
  $region6: #{tpu_custom_call.1} parent=0 // loop_footer
    %s21 = sadd.s32 1, %s17
  $region7: #{tpu_custom_call.1} parent=0 // loop_footer_branch
    %16 = sbr.rel target = $region3
  $region8: #{tpu_custom_call.1} parent=0 // loop_exit
    _

</llo_original>
